<compile_context>
chip_gen: v7x
topology: tpu7x:2x2x1
jax: 0.10.0
libtpu: 0.0.40
codegen_flags: <defaults>
</compile_context>

<pallas_src>
import functools

import jax
import jax.numpy as jnp
from jax import lax
from jax.experimental import pallas as pl
from jax.experimental.pallas import tpu as pltpu

MAX_LEN = 100  # parity with the torch module's registered tril buffer


# ---------------------------------------------------------------------------
# Fused MHA kernel: one batch-block (batch_block elements) per grid step
# ---------------------------------------------------------------------------
def _mha_kernel(q_ref, k_ref, v_ref,
                wq_ref, bq_ref, wk_ref, bk_ref, wv_ref, bv_ref,
                wo_ref, bo_ref, o_ref, *,
                nhead, causal, batch_block, seq_q, seq_k):
    # q_ref: (batch_block*Tq, E)   k_ref / v_ref: (batch_block*Tk, E)
    # w*_ref: (E, E) bf16 in PyTorch (out, in) layout;  b*_ref: (1, E) f32
    e = q_ref.shape[-1]
    d_k = e // nhead
    mxu_dtype = jnp.bfloat16

    def proj(x_ref, w_ref, b_ref):
        # y = x @ W^T + b ; bf16 MXU operands, f32 accumulation, f32 bias add.
        y = lax.dot_general(x_ref[...].astype(mxu_dtype), w_ref[...],
                            (((1,), (1,)), ((), ())),
                            preferred_element_type=jnp.float32)
        return y + b_ref[...]

    # Projections once for ALL rows of the batch block (bigger MXU M dim).
    # 1/sqrt(d_k) is pre-folded into wq/bq at parameter-prep time.
    Q = proj(q_ref, wq_ref, bq_ref)           # (bb*Tq, E) f32
    K = proj(k_ref, wk_ref, bk_ref)           # (bb*Tk, E) f32
    V = proj(v_ref, wv_ref, bv_ref)           # (bb*Tk, E) f32

    # bf16 copies for the MXU; softmax math stays in f32 (scores already f32).
    Qb = Q.astype(mxu_dtype)
    Kb = K.astype(mxu_dtype)
    Vb = V.astype(mxu_dtype)

    if causal:
        row = lax.broadcasted_iota(jnp.int32, (seq_q, seq_k), 0)
        col = lax.broadcasted_iota(jnp.int32, (seq_q, seq_k), 1)
        keep = col <= row                     # tril(ones) >= 0.5

    # TODO(synk): at realistic Tq/Tk replace this full-(Tq,Tk) S materialization
    # with a flash-style K-tiled online-softmax grid axis ("arbitrary" K axis,
    # m/l/acc VMEM scratch, causal tile skipping; ~2x smaller tiles on v7x), and
    # swap the static head unroll for lax.fori_loop(..., unroll=True) or a head
    # grid axis so live ranges stay bounded.
    blocks = []
    for b in range(batch_block):              # static unroll; rows are sublane-aligned
        rq = slice(b * seq_q, (b + 1) * seq_q)
        rk = slice(b * seq_k, (b + 1) * seq_k)
        head_outs = []
        for h in range(nhead):                # static unroll (nhead is small)
            hs = slice(h * d_k, (h + 1) * d_k)
            q_h = Qb[rq, hs]
            k_h = Kb[rk, hs]
            v_h = Vb[rk, hs]

            # S = Q_h @ K_h^T without transposing K (contract last dims).
            s = lax.dot_general(q_h, k_h, (((1,), (1,)), ((), ())),
                                preferred_element_type=jnp.float32)   # (Tq, Tk) f32
            if causal:
                # Large finite negative instead of -inf; exp underflows to 0.
                s = jnp.where(keep, s, jnp.float32(-1e30))

            # Numerically stable softmax in f32; normalize AFTER PV so the
            # reciprocal multiply touches (Tq, d_k) instead of (Tq, Tk).
            m = jnp.max(s, axis=-1, keepdims=True)
            p = jnp.exp(s - m)
            l = jnp.sum(p, axis=-1, keepdims=True)
            o_h = jnp.dot(p.astype(mxu_dtype), v_h,
                          preferred_element_type=jnp.float32)         # (Tq, d_k) f32
            o_h = o_h * pl.reciprocal(l, approx=True)                 # EUP slot
            # attn_drop: nn.Dropout in eval mode is a no-op.
            head_outs.append(o_h)
        blocks.append(jnp.concatenate(head_outs, axis=-1))            # (Tq, E)

    o_all = jnp.concatenate(blocks, axis=0) if batch_block > 1 else blocks[0]

    # ONE lane-dense output projection for all heads / all rows of the block.
    out = lax.dot_general(o_all.astype(mxu_dtype), wo_ref[...],
                          (((1,), (1,)), ((), ())),
                          preferred_element_type=jnp.float32) + bo_ref[...]
    o_ref[...] = out.astype(o_ref.dtype)


# ---------------------------------------------------------------------------
# Module forward
# ---------------------------------------------------------------------------
def masked_mha_forward(kernel_params, q, k, v, *, nhead, causal=True,
                       batch_block=None):
    # TODO(synk): the optional runtime `mask` argument of the torch module
    # (applied through the permute([2,1,0,3]) trick) is not implemented; only
    # the registered causal tril buffer (mask=True) is supported.
    B, Tq, E = q.shape
    Tk = k.shape[1]
    assert E % nhead == 0 and Tq <= MAX_LEN and Tk <= MAX_LEN
    d_k = E // nhead

    if batch_block is None:
        # Fewer/larger grid steps amortize the ~0.35us per-step overhead, but
        # keep >=2 parallel steps so both v7x TensorCores get work.
        batch_block = 1
        for cand in range(B // 2, 0, -1):
            if B % cand == 0:
                batch_block = cand
                break
        # TODO(synk): if B == 1 add a Tq-tile parallel axis so v7x megacore
        # sharding still has >=2 steps.
    assert B % batch_block == 0
    num_blocks = B // batch_block

    # Leading-dim flatten (free, row-major merge): projections see
    # batch_block*T rows per step and stores are larger, fewer slabs.
    qf = q.reshape(B * Tq, E)
    kf = k.reshape(B * Tk, E)
    vf = v.reshape(B * Tk, E)

    kernel = functools.partial(_mha_kernel, nhead=nhead, causal=causal,
                               batch_block=batch_block, seq_q=Tq, seq_k=Tk)

    # Constant index_map -> weights/biases stay VMEM-resident across the grid.
    # TODO(synk): on v7x (64 MiB VMEM), single-buffer these resident tiles via
    # pipeline_mode=pl.Buffered(1) once tile sizes become realistic.
    weight_spec = pl.BlockSpec((E, E), lambda i: (0, 0))
    bias_spec = pl.BlockSpec((1, E), lambda i: (0, 0))

    cost = pl.CostEstimate(
        flops=int(2 * (2 * B * Tq + 2 * B * Tk) * E * E            # 4 projections
                  + 4 * B * nhead * Tq * Tk * d_k),                # QK^T + PV
        transcendentals=int(B * nhead * Tq * Tk),                  # exp
        bytes_accessed=int(4 * (2 * B * Tq * E + 2 * B * Tk * E)   # q,k,v,out f32
                           + 4 * E * E * 2                         # bf16 weights
                           + 4 * E * 4),                           # f32 biases
    )

    out = pl.pallas_call(
        kernel,
        out_shape=jax.ShapeDtypeStruct((B * Tq, E), q.dtype),
        grid=(num_blocks,),
        in_specs=[
            pl.BlockSpec((batch_block * Tq, E), lambda i: (i, 0)),   # q rows
            pl.BlockSpec((batch_block * Tk, E), lambda i: (i, 0)),   # k rows
            pl.BlockSpec((batch_block * Tk, E), lambda i: (i, 0)),   # v rows
            weight_spec, bias_spec,   # wq, bq
            weight_spec, bias_spec,   # wk, bk
            weight_spec, bias_spec,   # wv, bv
            weight_spec, bias_spec,   # wo, bo
        ],
        out_specs=pl.BlockSpec((batch_block * Tq, E), lambda i: (i, 0)),
        compiler_params=pltpu.CompilerParams(
            dimension_semantics=("parallel",),
            vmem_limit_bytes=32 * 1024 * 1024),
        cost_estimate=cost,
    )(qf, kf, vf,
      kernel_params["wq"], kernel_params["bq"],
      kernel_params["wk"], kernel_params["bk"],
      kernel_params["wv"], kernel_params["bv"],
      kernel_params["wo"], kernel_params["bo"])

    return out.reshape(B, Tq, E)


# ---------------------------------------------------------------------------
# One-time parameter transform for the kernel:
#   * fold 1/sqrt(d_k) into the query projection (weight AND bias),
#   * cast MXU-resident weights to bf16 (biases stay f32 for f32 adds).
# ---------------------------------------------------------------------------
def prepare_params(params, *, nhead):
    nhid = params["wq"].shape[0]
    scale = 1.0 / ((nhid // nhead) ** 0.5)
    return {
        "wq": (params["wq"] * scale).astype(jnp.bfloat16),
        "bq": params["bq"] * scale,
        "wk": params["wk"].astype(jnp.bfloat16),
        "bk": params["bk"],
        "wv": params["wv"].astype(jnp.bfloat16),
        "bv": params["bv"],
        "wo": params["wo"].astype(jnp.bfloat16),
        "bo": params["bo"],
    }


# ---------------------------------------------------------------------------
# Pure-JAX f32 reference (mirrors the torch module exactly)
# ---------------------------------------------------------------------------
def masked_mha_reference(params, q, k, v, *, nhead, causal=True):
    B, Tq, E = q.shape
    Tk = k.shape[1]
    d_k = E // nhead

    def lin(x, w, b):
        return x @ w.T + b

    def heads(x, w, b, T):
        return lin(x, w, b).reshape(B, T, nhead, d_k).transpose(0, 2, 1, 3)

    Q = heads(q, params["wq"], params["bq"], Tq)
    K = heads(k, params["wk"], params["bk"], Tk)
    V = heads(v, params["wv"], params["bv"], Tk)

    R = jnp.einsum("bhqd,bhkd->bhqk", Q, K) / (d_k ** 0.5)
    if causal:
        tril = jnp.tril(jnp.ones((Tq, Tk), dtype=jnp.float32))
        R = jnp.where(tril < 0.5, -jnp.inf, R)
    R = jax.nn.softmax(R, axis=-1)
    out = jnp.einsum("bhqk,bhkd->bhqd", R, V)
    out = out.transpose(0, 2, 1, 3).reshape(B, Tq, E)
    return lin(out, params["wo"], params["bo"])


# ---------------------------------------------------------------------------
# Deterministic parameter init (shapes from __init__: 4 x Linear(nhid, nhid)),
# PyTorch (out, in) layout; biases stored as (1, nhid).
# ---------------------------------------------------------------------------
def init_params(key, nhid):
    keys = jax.random.split(key, 8)
    bound = 1.0 / (nhid ** 0.5)

    def u(k, shape):
        return jax.random.uniform(k, shape, jnp.float32, -bound, bound)

    return {
        "wq": u(keys[0], (nhid, nhid)), "bq": u(keys[1], (1, nhid)),
        "wk": u(keys[2], (nhid, nhid)), "bk": u(keys[3], (1, nhid)),
        "wv": u(keys[4], (nhid, nhid)), "bv": u(keys[5], (1, nhid)),
        "wo": u(keys[6], (nhid, nhid)), "bo": u(keys[7], (1, nhid)),
    }


if __name__ == "__main__":
    # args = {'nhid_tran': 32, 'nhead': 4, 'attn_pdrop': 0.1}; mask=True (causal)
    B, T, NHID, NHEAD = 2, 8, 32, 4

    key = jax.random.PRNGKey(0)
    kp, kq, kk, kv = jax.random.split(key, 4)
    params = init_params(kp, NHID)                       # torch-layout f32 master params
    kernel_params = prepare_params(params, nhead=NHEAD)  # bf16 weights, scale folded

    q = jax.random.normal(kq, (B, T, NHID), jnp.float32)
    k = jax.random.normal(kk, (B, T, NHID), jnp.float32)
    v = jax.random.normal(kv, (B, T, NHID), jnp.float32)

    out = masked_mha_forward(kernel_params, q, k, v, nhead=NHEAD, causal=True)
    out = jax.block_until_ready(out)

    ref = masked_mha_reference(params, q, k, v, nhead=NHEAD, causal=True)
    assert out.shape == (B, T, NHID)
    # bf16 MXU operands + approx-reciprocal softmax: compare loosely against
    # the strict f32 reference.
    assert jnp.allclose(out, ref, atol=5e-2, rtol=5e-2), "mismatch vs reference"

    print("KERNEL_OK")
</pallas_src>

<mosaic_0001>
module attributes {stable_mosaic.version = 11 : i64} {
  func.func @_mha_kernel(%arg0: i32, %arg1: memref<8x32xf32, #tpu.memory_space<vmem>>, %arg2: memref<8x32xf32, #tpu.memory_space<vmem>>, %arg3: memref<8x32xf32, #tpu.memory_space<vmem>>, %arg4: memref<32x32xbf16, #tpu.memory_space<vmem>>, %arg5: memref<1x32xf32, #tpu.memory_space<vmem>>, %arg6: memref<32x32xbf16, #tpu.memory_space<vmem>>, %arg7: memref<1x32xf32, #tpu.memory_space<vmem>>, %arg8: memref<32x32xbf16, #tpu.memory_space<vmem>>, %arg9: memref<1x32xf32, #tpu.memory_space<vmem>>, %arg10: memref<32x32xbf16, #tpu.memory_space<vmem>>, %arg11: memref<1x32xf32, #tpu.memory_space<vmem>>, %arg12: memref<8x32xf32, #tpu.memory_space<vmem>>) attributes {dimension_semantics = [#tpu.dimension_semantics<parallel>], iteration_bounds = array<i64: 2>, scalar_prefetch = 0 : i64, scratch_operands = 0 : i64, tpu.core_type = #tpu.core_type<tc>, window_params = [{transform_indices = @transform_0, window_bounds = array<i64: 8, 32>}, {transform_indices = @transform_1, window_bounds = array<i64: 8, 32>}, {transform_indices = @transform_2, window_bounds = array<i64: 8, 32>}, {pipeline_mode = #tpu.pipeline_mode<synchronous>, transform_indices = @transform_3, window_bounds = array<i64: 32, 32>}, {pipeline_mode = #tpu.pipeline_mode<synchronous>, transform_indices = @transform_4, window_bounds = array<i64: 1, 32>}, {pipeline_mode = #tpu.pipeline_mode<synchronous>, transform_indices = @transform_5, window_bounds = array<i64: 32, 32>}, {pipeline_mode = #tpu.pipeline_mode<synchronous>, transform_indices = @transform_6, window_bounds = array<i64: 1, 32>}, {pipeline_mode = #tpu.pipeline_mode<synchronous>, transform_indices = @transform_7, window_bounds = array<i64: 32, 32>}, {pipeline_mode = #tpu.pipeline_mode<synchronous>, transform_indices = @transform_8, window_bounds = array<i64: 1, 32>}, {pipeline_mode = #tpu.pipeline_mode<synchronous>, transform_indices = @transform_9, window_bounds = array<i64: 32, 32>}, {pipeline_mode = #tpu.pipeline_mode<synchronous>, transform_indices = @transform_10, window_bounds = array<i64: 1, 32>}, {transform_indices = @transform_11, window_bounds = array<i64: 8, 32>}]} {
    %c0 = arith.constant 0 : index
    %c0_0 = arith.constant 0 : index
    %0 = vector.load %arg1[%c0, %c0_0] : memref<8x32xf32, #tpu.memory_space<vmem>>, vector<8x32xf32>
    %1 = arith.truncf %0 : vector<8x32xf32> to vector<8x32xbf16>
    %c0_1 = arith.constant 0 : index
    %c0_2 = arith.constant 0 : index
    %2 = vector.load %arg4[%c0_1, %c0_2] : memref<32x32xbf16, #tpu.memory_space<vmem>>, vector<32x32xbf16>
    %cst = arith.constant dense<0.000000e+00> : vector<8x32xf32>
    %3 = tpu.matmul %1, %2, %cst {dimension_numbers = #tpu.dot_dimension_numbers<[1], [1], [0], [0], [0, 0, 1, 0], [], []>} : vector<8x32xbf16>, vector<32x32xbf16>, vector<8x32xf32> -> vector<8x32xf32>
    %c0_3 = arith.constant 0 : index
    %c0_4 = arith.constant 0 : index
    %4 = vector.load %arg5[%c0_3, %c0_4] : memref<1x32xf32, #tpu.memory_space<vmem>>, vector<1x32xf32>
    %5 = vector.broadcast %4 : vector<1x32xf32> to vector<8x32xf32>
    %6 = arith.addf %3, %5 : vector<8x32xf32>
    %c0_5 = arith.constant 0 : index
    %c0_6 = arith.constant 0 : index
    %7 = vector.load %arg2[%c0_5, %c0_6] : memref<8x32xf32, #tpu.memory_space<vmem>>, vector<8x32xf32>
    %8 = arith.truncf %7 : vector<8x32xf32> to vector<8x32xbf16>
    %c0_7 = arith.constant 0 : index
    %c0_8 = arith.constant 0 : index
    %9 = vector.load %arg6[%c0_7, %c0_8] : memref<32x32xbf16, #tpu.memory_space<vmem>>, vector<32x32xbf16>
    %cst_9 = arith.constant dense<0.000000e+00> : vector<8x32xf32>
    %10 = tpu.matmul %8, %9, %cst_9 {dimension_numbers = #tpu.dot_dimension_numbers<[1], [1], [0], [0], [0, 0, 1, 0], [], []>} : vector<8x32xbf16>, vector<32x32xbf16>, vector<8x32xf32> -> vector<8x32xf32>
    %c0_10 = arith.constant 0 : index
    %c0_11 = arith.constant 0 : index
    %11 = vector.load %arg7[%c0_10, %c0_11] : memref<1x32xf32, #tpu.memory_space<vmem>>, vector<1x32xf32>
    %12 = vector.broadcast %11 : vector<1x32xf32> to vector<8x32xf32>
    %13 = arith.addf %10, %12 : vector<8x32xf32>
    %c0_12 = arith.constant 0 : index
    %c0_13 = arith.constant 0 : index
    %14 = vector.load %arg3[%c0_12, %c0_13] : memref<8x32xf32, #tpu.memory_space<vmem>>, vector<8x32xf32>
    %15 = arith.truncf %14 : vector<8x32xf32> to vector<8x32xbf16>
    %c0_14 = arith.constant 0 : index
    %c0_15 = arith.constant 0 : index
    %16 = vector.load %arg8[%c0_14, %c0_15] : memref<32x32xbf16, #tpu.memory_space<vmem>>, vector<32x32xbf16>
    %cst_16 = arith.constant dense<0.000000e+00> : vector<8x32xf32>
    %17 = tpu.matmul %15, %16, %cst_16 {dimension_numbers = #tpu.dot_dimension_numbers<[1], [1], [0], [0], [0, 0, 1, 0], [], []>} : vector<8x32xbf16>, vector<32x32xbf16>, vector<8x32xf32> -> vector<8x32xf32>
    %c0_17 = arith.constant 0 : index
    %c0_18 = arith.constant 0 : index
    %18 = vector.load %arg9[%c0_17, %c0_18] : memref<1x32xf32, #tpu.memory_space<vmem>>, vector<1x32xf32>
    %19 = vector.broadcast %18 : vector<1x32xf32> to vector<8x32xf32>
    %20 = arith.addf %17, %19 : vector<8x32xf32>
    %21 = arith.truncf %6 : vector<8x32xf32> to vector<8x32xbf16>
    %22 = arith.truncf %13 : vector<8x32xf32> to vector<8x32xbf16>
    %23 = arith.truncf %20 : vector<8x32xf32> to vector<8x32xbf16>
    %24 = tpu.iota {dimensions = array<i32: 0>} : vector<8x8xi32>
    %25 = tpu.iota {dimensions = array<i32: 1>} : vector<8x8xi32>
    %26 = arith.cmpi sle, %25, %24 : vector<8x8xi32>
    %27 = vector.extract_strided_slice %21 {offsets = [0, 0], sizes = [8, 8], strides = [1, 1]} : vector<8x32xbf16> to vector<8x8xbf16>
    %28 = vector.extract_strided_slice %22 {offsets = [0, 0], sizes = [8, 8], strides = [1, 1]} : vector<8x32xbf16> to vector<8x8xbf16>
    %29 = vector.extract_strided_slice %23 {offsets = [0, 0], sizes = [8, 8], strides = [1, 1]} : vector<8x32xbf16> to vector<8x8xbf16>
    %cst_19 = arith.constant dense<0.000000e+00> : vector<8x8xf32>
    %30 = tpu.matmul %27, %28, %cst_19 {dimension_numbers = #tpu.dot_dimension_numbers<[1], [1], [0], [0], [0, 0, 1, 0], [], []>} : vector<8x8xbf16>, vector<8x8xbf16>, vector<8x8xf32> -> vector<8x8xf32>
    %cst_20 = arith.constant -1.000000e+30 : f32
    %31 = vector.broadcast %cst_20 : f32 to vector<8x8xf32>
    %32 = arith.select %26, %30, %31 : vector<8x8xi1>, vector<8x8xf32>
    %cst_21 = arith.constant dense<0xFF800000> : vector<8xf32>
    %33 = vector.multi_reduction <maximumf>, %32, %cst_21 [1] : vector<8x8xf32> to vector<8xf32>
    %34 = vector.shape_cast %33 : vector<8xf32> to vector<8x1xf32>
    %35 = vector.broadcast %34 : vector<8x1xf32> to vector<8x8xf32>
    %36 = arith.subf %32, %35 : vector<8x8xf32>
    %37 = math.exp %36 : vector<8x8xf32>
    %cst_22 = arith.constant dense<0.000000e+00> : vector<8xf32>
    %38 = vector.multi_reduction <add>, %37, %cst_22 [1] : vector<8x8xf32> to vector<8xf32>
    %39 = vector.shape_cast %38 : vector<8xf32> to vector<8x1xf32>
    %40 = arith.truncf %37 : vector<8x8xf32> to vector<8x8xbf16>
    %cst_23 = arith.constant dense<0.000000e+00> : vector<8x8xf32>
    %41 = tpu.matmul %40, %29, %cst_23 {dimension_numbers = #tpu.dot_dimension_numbers<[1], [0], [0], [1], [0, 0, 1, 1], [], []>} : vector<8x8xbf16>, vector<8x8xbf16>, vector<8x8xf32> -> vector<8x8xf32>
    %42 = tpu.reciprocal %39 {approx = true} : vector<8x1xf32> -> vector<8x1xf32>
    %43 = vector.broadcast %42 : vector<8x1xf32> to vector<8x8xf32>
    %44 = arith.mulf %41, %43 : vector<8x8xf32>
    %45 = vector.extract_strided_slice %21 {offsets = [0, 8], sizes = [8, 8], strides = [1, 1]} : vector<8x32xbf16> to vector<8x8xbf16>
    %46 = vector.extract_strided_slice %22 {offsets = [0, 8], sizes = [8, 8], strides = [1, 1]} : vector<8x32xbf16> to vector<8x8xbf16>
    %47 = vector.extract_strided_slice %23 {offsets = [0, 8], sizes = [8, 8], strides = [1, 1]} : vector<8x32xbf16> to vector<8x8xbf16>
    %cst_24 = arith.constant dense<0.000000e+00> : vector<8x8xf32>
    %48 = tpu.matmul %45, %46, %cst_24 {dimension_numbers = #tpu.dot_dimension_numbers<[1], [1], [0], [0], [0, 0, 1, 0], [], []>} : vector<8x8xbf16>, vector<8x8xbf16>, vector<8x8xf32> -> vector<8x8xf32>
    %cst_25 = arith.constant -1.000000e+30 : f32
    %49 = vector.broadcast %cst_25 : f32 to vector<8x8xf32>
    %50 = arith.select %26, %48, %49 : vector<8x8xi1>, vector<8x8xf32>
    %cst_26 = arith.constant dense<0xFF800000> : vector<8xf32>
    %51 = vector.multi_reduction <maximumf>, %50, %cst_26 [1] : vector<8x8xf32> to vector<8xf32>
    %52 = vector.shape_cast %51 : vector<8xf32> to vector<8x1xf32>
    %53 = vector.broadcast %52 : vector<8x1xf32> to vector<8x8xf32>
    %54 = arith.subf %50, %53 : vector<8x8xf32>
    %55 = math.exp %54 : vector<8x8xf32>
    %cst_27 = arith.constant dense<0.000000e+00> : vector<8xf32>
    %56 = vector.multi_reduction <add>, %55, %cst_27 [1] : vector<8x8xf32> to vector<8xf32>
    %57 = vector.shape_cast %56 : vector<8xf32> to vector<8x1xf32>
    %58 = arith.truncf %55 : vector<8x8xf32> to vector<8x8xbf16>
    %cst_28 = arith.constant dense<0.000000e+00> : vector<8x8xf32>
    %59 = tpu.matmul %58, %47, %cst_28 {dimension_numbers = #tpu.dot_dimension_numbers<[1], [0], [0], [1], [0, 0, 1, 1], [], []>} : vector<8x8xbf16>, vector<8x8xbf16>, vector<8x8xf32> -> vector<8x8xf32>
    %60 = tpu.reciprocal %57 {approx = true} : vector<8x1xf32> -> vector<8x1xf32>
    %61 = vector.broadcast %60 : vector<8x1xf32> to vector<8x8xf32>
    %62 = arith.mulf %59, %61 : vector<8x8xf32>
    %63 = vector.extract_strided_slice %21 {offsets = [0, 16], sizes = [8, 8], strides = [1, 1]} : vector<8x32xbf16> to vector<8x8xbf16>
    %64 = vector.extract_strided_slice %22 {offsets = [0, 16], sizes = [8, 8], strides = [1, 1]} : vector<8x32xbf16> to vector<8x8xbf16>
    %65 = vector.extract_strided_slice %23 {offsets = [0, 16], sizes = [8, 8], strides = [1, 1]} : vector<8x32xbf16> to vector<8x8xbf16>
    %cst_29 = arith.constant dense<0.000000e+00> : vector<8x8xf32>
    %66 = tpu.matmul %63, %64, %cst_29 {dimension_numbers = #tpu.dot_dimension_numbers<[1], [1], [0], [0], [0, 0, 1, 0], [], []>} : vector<8x8xbf16>, vector<8x8xbf16>, vector<8x8xf32> -> vector<8x8xf32>
    %cst_30 = arith.constant -1.000000e+30 : f32
    %67 = vector.broadcast %cst_30 : f32 to vector<8x8xf32>
    %68 = arith.select %26, %66, %67 : vector<8x8xi1>, vector<8x8xf32>
    %cst_31 = arith.constant dense<0xFF800000> : vector<8xf32>
    %69 = vector.multi_reduction <maximumf>, %68, %cst_31 [1] : vector<8x8xf32> to vector<8xf32>
    %70 = vector.shape_cast %69 : vector<8xf32> to vector<8x1xf32>
    %71 = vector.broadcast %70 : vector<8x1xf32> to vector<8x8xf32>
    %72 = arith.subf %68, %71 : vector<8x8xf32>
    %73 = math.exp %72 : vector<8x8xf32>
    %cst_32 = arith.constant dense<0.000000e+00> : vector<8xf32>
    %74 = vector.multi_reduction <add>, %73, %cst_32 [1] : vector<8x8xf32> to vector<8xf32>
    %75 = vector.shape_cast %74 : vector<8xf32> to vector<8x1xf32>
    %76 = arith.truncf %73 : vector<8x8xf32> to vector<8x8xbf16>
    %cst_33 = arith.constant dense<0.000000e+00> : vector<8x8xf32>
    %77 = tpu.matmul %76, %65, %cst_33 {dimension_numbers = #tpu.dot_dimension_numbers<[1], [0], [0], [1], [0, 0, 1, 1], [], []>} : vector<8x8xbf16>, vector<8x8xbf16>, vector<8x8xf32> -> vector<8x8xf32>
    %78 = tpu.reciprocal %75 {approx = true} : vector<8x1xf32> -> vector<8x1xf32>
    %79 = vector.broadcast %78 : vector<8x1xf32> to vector<8x8xf32>
    %80 = arith.mulf %77, %79 : vector<8x8xf32>
    %81 = vector.extract_strided_slice %21 {offsets = [0, 24], sizes = [8, 8], strides = [1, 1]} : vector<8x32xbf16> to vector<8x8xbf16>
    %82 = vector.extract_strided_slice %22 {offsets = [0, 24], sizes = [8, 8], strides = [1, 1]} : vector<8x32xbf16> to vector<8x8xbf16>
    %83 = vector.extract_strided_slice %23 {offsets = [0, 24], sizes = [8, 8], strides = [1, 1]} : vector<8x32xbf16> to vector<8x8xbf16>
    %cst_34 = arith.constant dense<0.000000e+00> : vector<8x8xf32>
    %84 = tpu.matmul %81, %82, %cst_34 {dimension_numbers = #tpu.dot_dimension_numbers<[1], [1], [0], [0], [0, 0, 1, 0], [], []>} : vector<8x8xbf16>, vector<8x8xbf16>, vector<8x8xf32> -> vector<8x8xf32>
    %cst_35 = arith.constant -1.000000e+30 : f32
    %85 = vector.broadcast %cst_35 : f32 to vector<8x8xf32>
    %86 = arith.select %26, %84, %85 : vector<8x8xi1>, vector<8x8xf32>
    %cst_36 = arith.constant dense<0xFF800000> : vector<8xf32>
    %87 = vector.multi_reduction <maximumf>, %86, %cst_36 [1] : vector<8x8xf32> to vector<8xf32>
    %88 = vector.shape_cast %87 : vector<8xf32> to vector<8x1xf32>
    %89 = vector.broadcast %88 : vector<8x1xf32> to vector<8x8xf32>
    %90 = arith.subf %86, %89 : vector<8x8xf32>
    %91 = math.exp %90 : vector<8x8xf32>
    %cst_37 = arith.constant dense<0.000000e+00> : vector<8xf32>
    %92 = vector.multi_reduction <add>, %91, %cst_37 [1] : vector<8x8xf32> to vector<8xf32>
    %93 = vector.shape_cast %92 : vector<8xf32> to vector<8x1xf32>
    %94 = arith.truncf %91 : vector<8x8xf32> to vector<8x8xbf16>
    %cst_38 = arith.constant dense<0.000000e+00> : vector<8x8xf32>
    %95 = tpu.matmul %94, %83, %cst_38 {dimension_numbers = #tpu.dot_dimension_numbers<[1], [0], [0], [1], [0, 0, 1, 1], [], []>} : vector<8x8xbf16>, vector<8x8xbf16>, vector<8x8xf32> -> vector<8x8xf32>
    %96 = tpu.reciprocal %93 {approx = true} : vector<8x1xf32> -> vector<8x1xf32>
    %97 = vector.broadcast %96 : vector<8x1xf32> to vector<8x8xf32>
    %98 = arith.mulf %95, %97 : vector<8x8xf32>
    %99 = tpu.concatenate %44, %62, %80, %98 in 1 : vector<8x8xf32>, vector<8x8xf32>, vector<8x8xf32>, vector<8x8xf32> -> vector<8x32xf32>
    %100 = arith.truncf %99 : vector<8x32xf32> to vector<8x32xbf16>
    %c0_39 = arith.constant 0 : index
    %c0_40 = arith.constant 0 : index
    %101 = vector.load %arg10[%c0_39, %c0_40] : memref<32x32xbf16, #tpu.memory_space<vmem>>, vector<32x32xbf16>
    %cst_41 = arith.constant dense<0.000000e+00> : vector<8x32xf32>
    %102 = tpu.matmul %100, %101, %cst_41 {dimension_numbers = #tpu.dot_dimension_numbers<[1], [1], [0], [0], [0, 0, 1, 0], [], []>} : vector<8x32xbf16>, vector<32x32xbf16>, vector<8x32xf32> -> vector<8x32xf32>
    %c0_42 = arith.constant 0 : index
    %c0_43 = arith.constant 0 : index
    %103 = vector.load %arg11[%c0_42, %c0_43] : memref<1x32xf32, #tpu.memory_space<vmem>>, vector<1x32xf32>
    %104 = vector.broadcast %103 : vector<1x32xf32> to vector<8x32xf32>
    %105 = arith.addf %102, %104 : vector<8x32xf32>
    %c0_44 = arith.constant 0 : index
    %c0_45 = arith.constant 0 : index
    %106 = vector.load %arg12[%c0_44, %c0_45] : memref<8x32xf32, #tpu.memory_space<vmem>>, vector<8x32xf32>
    tpu.vector_store %arg12[%c0_44, %c0_45], %105 {strides = array<i32>} : memref<8x32xf32, #tpu.memory_space<vmem>>, vector<8x32xf32>,
    return
  }
  func.func @transform_0(%arg0: i32) -> (i32, i32) {
    %c0_i32 = arith.constant 0 : i32
    %c0_i32_0 = arith.constant 0 : i32
    return %arg0, %c0_i32 : i32, i32
  }
  func.func @transform_1(%arg0: i32) -> (i32, i32) {
    %c0_i32 = arith.constant 0 : i32
    %c0_i32_0 = arith.constant 0 : i32
    return %arg0, %c0_i32 : i32, i32
  }
  func.func @transform_2(%arg0: i32) -> (i32, i32) {
    %c0_i32 = arith.constant 0 : i32
    %c0_i32_0 = arith.constant 0 : i32
    return %arg0, %c0_i32 : i32, i32
  }
  func.func @transform_3(%arg0: i32) -> (i32, i32) {
    %c0_i32 = arith.constant 0 : i32
    %c0_i32_0 = arith.constant 0 : i32
    %c0_i32_1 = arith.constant 0 : i32
    return %c0_i32, %c0_i32_0 : i32, i32
  }
  func.func @transform_4(%arg0: i32) -> (i32, i32) {
    %c0_i32 = arith.constant 0 : i32
    %c0_i32_0 = arith.constant 0 : i32
    %c0_i32_1 = arith.constant 0 : i32
    return %c0_i32, %c0_i32_0 : i32, i32
  }
  func.func @transform_5(%arg0: i32) -> (i32, i32) {
    %c0_i32 = arith.constant 0 : i32
    %c0_i32_0 = arith.constant 0 : i32
    %c0_i32_1 = arith.constant 0 : i32
    return %c0_i32, %c0_i32_0 : i32, i32
  }
  func.func @transform_6(%arg0: i32) -> (i32, i32) {
    %c0_i32 = arith.constant 0 : i32
    %c0_i32_0 = arith.constant 0 : i32
    %c0_i32_1 = arith.constant 0 : i32
    return %c0_i32, %c0_i32_0 : i32, i32
  }
  func.func @transform_7(%arg0: i32) -> (i32, i32) {
    %c0_i32 = arith.constant 0 : i32
    %c0_i32_0 = arith.constant 0 : i32
    %c0_i32_1 = arith.constant 0 : i32
    return %c0_i32, %c0_i32_0 : i32, i32
  }
  func.func @transform_8(%arg0: i32) -> (i32, i32) {
    %c0_i32 = arith.constant 0 : i32
    %c0_i32_0 = arith.constant 0 : i32
    %c0_i32_1 = arith.constant 0 : i32
    return %c0_i32, %c0_i32_0 : i32, i32
  }
  func.func @transform_9(%arg0: i32) -> (i32, i32) {
    %c0_i32 = arith.constant 0 : i32
    %c0_i32_0 = arith.constant 0 : i32
    %c0_i32_1 = arith.constant 0 : i32
    return %c0_i32, %c0_i32_0 : i32, i32
  }
  func.func @transform_10(%arg0: i32) -> (i32, i32) {
    %c0_i32 = arith.constant 0 : i32
    %c0_i32_0 = arith.constant 0 : i32
    %c0_i32_1 = arith.constant 0 : i32
    return %c0_i32, %c0_i32_0 : i32, i32
  }
  func.func @transform_11(%arg0: i32) -> (i32, i32) {
    %c0_i32 = arith.constant 0 : i32
    %c0_i32_0 = arith.constant 0 : i32
    return %arg0, %c0_i32 : i32, i32
  }
}

</mosaic_0001>

<llo_original>
// kernel: tpu_custom_call.1
$region0: #{tpu_custom_call.1}
  #allocation0 [shape = 'u32[]', space=smem, size = 0x4, offset = 0x4, fixed_abs, tag = 'smem constant byte address 0x4 - core index']
  #allocation1 [shape = 'u32[144,128]{1,0:T(1,128)}', space=vmem, size = 0x12000, scoped, tag = 'internal scratch']
  %s0 = inlined_call_operand.hbm [shape: f32[16,32], index: 0, kind: input, shape index: {}]
  %s1 = inlined_call_operand.hbm [shape: f32[16,32], index: 1, kind: input, shape index: {}]
  %s2 = inlined_call_operand.hbm [shape: f32[16,32], index: 2, kind: input, shape index: {}]
  %s3 = inlined_call_operand.hbm [shape: bf16[32,32], index: 3, kind: input, shape index: {}]
  %s4 = inlined_call_operand.vmem [shape: f32[1,32], index: 4, kind: input, shape index: {}]
  %s5 = inlined_call_operand.vmem [shape: bf16[32,32], index: 5, kind: input, shape index: {}]
  %s6 = inlined_call_operand.vmem [shape: f32[1,32], index: 6, kind: input, shape index: {}]
  %s7 = inlined_call_operand.hbm [shape: bf16[32,32], index: 7, kind: input, shape index: {}]
  %s8 = inlined_call_operand.hbm [shape: f32[1,32], index: 8, kind: input, shape index: {}]
  %s9 = inlined_call_operand.vmem [shape: bf16[32,32], index: 9, kind: input, shape index: {}]
  %s10 = inlined_call_operand.vmem [shape: f32[1,32], index: 10, kind: input, shape index: {}]
  %s11 = inlined_call_operand.hbm [shape: f32[16,32], index: 11, kind: output, shape index: {}]
  %s12 = sld [smem:[#allocation0]]
  $region101: #{tpu_custom_call.1} parent=0
    _
  %s14 = ssub.s32 1, %s12
  %s15 = scalar_select 0, %s14, %s12
  $region1: #{tpu_custom_call.1} parent=0
    #allocation2 [shape = 'u8[8192]{0}', space=vmem, size = 0x2000, scoped, tag = 'input window, operand 0']
    #allocation3 [shape = 's32[2]{0}', space=sflag, size = 0x8, scoped, tag = 'scoped memory for tpu_custom_call.1']
    #allocation4 [shape = 's32[2]{0}', space=sflag, size = 0x8, scoped, tag = 'scoped memory for tpu_custom_call.1']
    #allocation5 [shape = 'u8[8192]{0}', space=vmem, size = 0x2000, scoped, tag = 'input window, operand 1']
    #allocation6 [shape = 's32[2]{0}', space=sflag, size = 0x8, scoped, tag = 'scoped memory for tpu_custom_call.1']
    #allocation7 [shape = 'u8[8192]{0}', space=vmem, size = 0x2000, scoped, tag = 'input window, operand 2']
    #allocation8 [shape = 'u8[8192]{0}', space=vmem, size = 0x2000, scoped, tag = 'input window, operand 3, single buffered']
    #allocation9 [shape = 's32[1]{0}', space=sflag, size = 0x4, scoped, tag = 'scoped memory for tpu_custom_call.1']
    #allocation10 [shape = 'u8[8192]{0}', space=vmem, size = 0x2000, scoped, tag = 'input window, operand 7, single buffered']
    #allocation11 [shape = 'u8[512]{0}', space=vmem, size = 0x400, scoped, tag = 'input window, operand 8, single buffered']
    #allocation12 [shape = 's32[1]{0}', space=sflag, size = 0x4, scoped, tag = 'scoped memory for tpu_custom_call.1']
    #allocation13 [shape = 'u8[8192]{0}', space=vmem, size = 0x2000, scoped, tag = 'output window, operand 0']
    %16 = vsyncpa [#allocation3], 0
    %s17 = scalar_lea.sflag [#allocation3], 1
    %18 = vsyncpa %s17, 0
    %19 = vsyncpa [#allocation6], 0
    %s20 = scalar_lea.sflag [#allocation6], 1
    %21 = vsyncpa %s20, 0
    %22 = vsyncpa [#allocation9], 0
    %23 = vsyncpa [#allocation12], 0
    %24 = vsyncpa [#allocation4], 0
    %s25 = scalar_lea.sflag [#allocation4], 1
    %26 = vsyncpa %s25, 0
    loop: start=0, step=1, limit=4
    $region2: #{tpu_custom_call.1} parent=1 // loop_pre_header
      _
    $region3: #{tpu_custom_call.1} parent=1 // loop_header
      %s28 = sphi 0, %s32
      %p29 = scmp.ge.s32.totalorder %s28, 4
      %s38 = sphi 0, %s40
      %s41 = sphi 0, %s38
      %s42 = sphi 0, %s41
      %s58 = sphi 0, %s42
      %s64 = sphi 0, %s66
      %s67 = sphi 0, %s64
      %s68 = sphi 0, %s67
      %s84 = sphi 0, %s68
      %s90 = sphi 0, %s92
      %s93 = sphi 0, %s90
      %s94 = sphi 0, %s93
      %s110 = sphi 0, %s94
      %s114 = sphi 0, %s114
      %s116 = sphi 0, %s114
      %s117 = sphi 0, %s116
      %s131 = sphi 0, %s117
      %s135 = sphi 0, %s135
      %s137 = sphi 0, %s135
      %s138 = sphi 0, %s137
      %s152 = sphi 0, %s138
      %s156 = sphi 0, %s156
      %s158 = sphi 0, %s156
      %s159 = sphi 0, %s158
      %s173 = sphi 0, %s159
      %s177 = sphi 0, %s177
      %s179 = sphi 0, %s177
      %s180 = sphi 0, %s179
      %s194 = sphi 0, %s180
      %s198 = sphi 0, %s198
      %s200 = sphi 0, %s198
      %s201 = sphi 0, %s200
      %s215 = sphi 0, %s201
      %s219 = sphi 0, %s219
      %s221 = sphi 0, %s219
      %s222 = sphi 0, %s221
      %s236 = sphi 0, %s222
      %s240 = sphi 0, %s240
      %s242 = sphi 0, %s240
      %s243 = sphi 0, %s242
      %s257 = sphi 0, %s243
      %s261 = sphi 0, %s261
      %s263 = sphi 0, %s261
      %s264 = sphi 0, %s263
      %s278 = sphi 0, %s264
      %s284 = sphi 0, %s286
      %s287 = sphi 0, %s284
      %s288 = sphi 0, %s287
      %s304 = sphi 0, %s288
    $region4: #{tpu_custom_call.1} parent=1 // loop_header_branch
      %31 = sbr.rel (%p29) target = $region8
    $region5: #{tpu_custom_call.1} parent=1 // loop_body
      %s33 = ssub.s32 %s28, 1
      %s34 = ssub.s32 %s28, 2
      %s35 = sadd.s32 %s28, 1
      %s36 = ssub.s32 %s28, %s35
      %p37 = scmp.eq.s32.totalorder %s36, 0
      %s39 = sadd.s32 %s38, 1
      %s40 = scalar_select %p37, %s38, %s39
      %p43 = pneg %p37
      %p44 = scmp.eq.s32.totalorder %s28, 1
      %p45 = por %p43, %p44
      %p46 = scmp.ne.s32.totalorder %s38, %s41
      %p47 = scmp.eq.s32.totalorder %s28, 0
      %p48 = por %p46, %p47
      %p49 = scmp.ne.s32.totalorder %s38, %s41
      %p50 = scmp.eq.s32.totalorder %s33, 1
      %p51 = por %p49, %p50
      %p52 = scmp.ne.s32.totalorder %s41, %s42
      %p53 = scmp.eq.s32.totalorder %s33, 0
      %p54 = por %p52, %p53
      %p55 = scmp.ne.s32.totalorder %s41, %s42
      %p56 = scmp.eq.s32.totalorder %s34, 1
      %p57 = por %p55, %p56
      %p59 = scmp.ne.s32.totalorder %s42, %s58
      %p60 = scmp.eq.s32.totalorder %s34, 0
      %p61 = por %p59, %p60
      %s62 = ssub.s32 %s28, %s35
      %p63 = scmp.eq.s32.totalorder %s62, 0
      %s65 = sadd.s32 %s64, 1
      %s66 = scalar_select %p63, %s64, %s65
      %p69 = pneg %p63
      %p70 = scmp.eq.s32.totalorder %s28, 1
      %p71 = por %p69, %p70
      %p72 = scmp.ne.s32.totalorder %s64, %s67
      %p73 = scmp.eq.s32.totalorder %s28, 0
      %p74 = por %p72, %p73
      %p75 = scmp.ne.s32.totalorder %s64, %s67
      %p76 = scmp.eq.s32.totalorder %s33, 1
      %p77 = por %p75, %p76
      %p78 = scmp.ne.s32.totalorder %s67, %s68
      %p79 = scmp.eq.s32.totalorder %s33, 0
      %p80 = por %p78, %p79
      %p81 = scmp.ne.s32.totalorder %s67, %s68
      %p82 = scmp.eq.s32.totalorder %s34, 1
      %p83 = por %p81, %p82
      %p85 = scmp.ne.s32.totalorder %s68, %s84
      %p86 = scmp.eq.s32.totalorder %s34, 0
      %p87 = por %p85, %p86
      %s88 = ssub.s32 %s28, %s35
      %p89 = scmp.eq.s32.totalorder %s88, 0
      %s91 = sadd.s32 %s90, 1
      %s92 = scalar_select %p89, %s90, %s91
      %p95 = pneg %p89
      %p96 = scmp.eq.s32.totalorder %s28, 1
      %p97 = por %p95, %p96
      %p98 = scmp.ne.s32.totalorder %s90, %s93
      %p99 = scmp.eq.s32.totalorder %s28, 0
      %p100 = por %p98, %p99
      %p101 = scmp.ne.s32.totalorder %s90, %s93
      %p102 = scmp.eq.s32.totalorder %s33, 1
      %p103 = por %p101, %p102
      %p104 = scmp.ne.s32.totalorder %s93, %s94
      %p105 = scmp.eq.s32.totalorder %s33, 0
      %p106 = por %p104, %p105
      %p107 = scmp.ne.s32.totalorder %s93, %s94
      %p108 = scmp.eq.s32.totalorder %s34, 1
      %p109 = por %p107, %p108
      %p111 = scmp.ne.s32.totalorder %s94, %s110
      %p112 = scmp.eq.s32.totalorder %s34, 0
      %p113 = por %p111, %p112
      %s115 = sadd.s32 %s114, 1
      %p118 = scmp.eq.s32.totalorder %s28, 1
      %p119 = scmp.ne.s32.totalorder %s114, %s116
      %p120 = scmp.eq.s32.totalorder %s28, 0
      %p121 = por %p119, %p120
      %p122 = scmp.ne.s32.totalorder %s114, %s116
      %p123 = scmp.eq.s32.totalorder %s33, 1
      %p124 = por %p122, %p123
      %p125 = scmp.ne.s32.totalorder %s116, %s117
      %p126 = scmp.eq.s32.totalorder %s33, 0
      %p127 = por %p125, %p126
      %p128 = scmp.ne.s32.totalorder %s116, %s117
      %p129 = scmp.eq.s32.totalorder %s34, 1
      %p130 = por %p128, %p129
      %p132 = scmp.ne.s32.totalorder %s117, %s131
      %p133 = scmp.eq.s32.totalorder %s34, 0
      %p134 = por %p132, %p133
      %s136 = sadd.s32 %s135, 1
      %p139 = scmp.eq.s32.totalorder %s28, 1
      %p140 = scmp.ne.s32.totalorder %s135, %s137
      %p141 = scmp.eq.s32.totalorder %s28, 0
      %p142 = por %p140, %p141
      %p143 = scmp.ne.s32.totalorder %s135, %s137
      %p144 = scmp.eq.s32.totalorder %s33, 1
      %p145 = por %p143, %p144
      %p146 = scmp.ne.s32.totalorder %s137, %s138
      %p147 = scmp.eq.s32.totalorder %s33, 0
      %p148 = por %p146, %p147
      %p149 = scmp.ne.s32.totalorder %s137, %s138
      %p150 = scmp.eq.s32.totalorder %s34, 1
      %p151 = por %p149, %p150
      %p153 = scmp.ne.s32.totalorder %s138, %s152
      %p154 = scmp.eq.s32.totalorder %s34, 0
      %p155 = por %p153, %p154
      %s157 = sadd.s32 %s156, 1
      %p160 = scmp.eq.s32.totalorder %s28, 1
      %p161 = scmp.ne.s32.totalorder %s156, %s158
      %p162 = scmp.eq.s32.totalorder %s28, 0
      %p163 = por %p161, %p162
      %p164 = scmp.ne.s32.totalorder %s156, %s158
      %p165 = scmp.eq.s32.totalorder %s33, 1
      %p166 = por %p164, %p165
      %p167 = scmp.ne.s32.totalorder %s158, %s159
      %p168 = scmp.eq.s32.totalorder %s33, 0
      %p169 = por %p167, %p168
      %p170 = scmp.ne.s32.totalorder %s158, %s159
      %p171 = scmp.eq.s32.totalorder %s34, 1
      %p172 = por %p170, %p171
      %p174 = scmp.ne.s32.totalorder %s159, %s173
      %p175 = scmp.eq.s32.totalorder %s34, 0
      %p176 = por %p174, %p175
      %s178 = sadd.s32 %s177, 1
      %p181 = scmp.eq.s32.totalorder %s28, 1
      %p182 = scmp.ne.s32.totalorder %s177, %s179
      %p183 = scmp.eq.s32.totalorder %s28, 0
      %p184 = por %p182, %p183
      %p185 = scmp.ne.s32.totalorder %s177, %s179
      %p186 = scmp.eq.s32.totalorder %s33, 1
      %p187 = por %p185, %p186
      %p188 = scmp.ne.s32.totalorder %s179, %s180
      %p189 = scmp.eq.s32.totalorder %s33, 0
      %p190 = por %p188, %p189
      %p191 = scmp.ne.s32.totalorder %s179, %s180
      %p192 = scmp.eq.s32.totalorder %s34, 1
      %p193 = por %p191, %p192
      %p195 = scmp.ne.s32.totalorder %s180, %s194
      %p196 = scmp.eq.s32.totalorder %s34, 0
      %p197 = por %p195, %p196
      %s199 = sadd.s32 %s198, 1
      %p202 = scmp.eq.s32.totalorder %s28, 1
      %p203 = scmp.ne.s32.totalorder %s198, %s200
      %p204 = scmp.eq.s32.totalorder %s28, 0
      %p205 = por %p203, %p204
      %p206 = scmp.ne.s32.totalorder %s198, %s200
      %p207 = scmp.eq.s32.totalorder %s33, 1
      %p208 = por %p206, %p207
      %p209 = scmp.ne.s32.totalorder %s200, %s201
      %p210 = scmp.eq.s32.totalorder %s33, 0
      %p211 = por %p209, %p210
      %p212 = scmp.ne.s32.totalorder %s200, %s201
      %p213 = scmp.eq.s32.totalorder %s34, 1
      %p214 = por %p212, %p213
      %p216 = scmp.ne.s32.totalorder %s201, %s215
      %p217 = scmp.eq.s32.totalorder %s34, 0
      %p218 = por %p216, %p217
      %s220 = sadd.s32 %s219, 1
      %p223 = scmp.eq.s32.totalorder %s28, 1
      %p224 = scmp.ne.s32.totalorder %s219, %s221
      %p225 = scmp.eq.s32.totalorder %s28, 0
      %p226 = por %p224, %p225
      %p227 = scmp.ne.s32.totalorder %s219, %s221
      %p228 = scmp.eq.s32.totalorder %s33, 1
      %p229 = por %p227, %p228
      %p230 = scmp.ne.s32.totalorder %s221, %s222
      %p231 = scmp.eq.s32.totalorder %s33, 0
      %p232 = por %p230, %p231
      %p233 = scmp.ne.s32.totalorder %s221, %s222
      %p234 = scmp.eq.s32.totalorder %s34, 1
      %p235 = por %p233, %p234
      %p237 = scmp.ne.s32.totalorder %s222, %s236
      %p238 = scmp.eq.s32.totalorder %s34, 0
      %p239 = por %p237, %p238
      %s241 = sadd.s32 %s240, 1
      %p244 = scmp.eq.s32.totalorder %s28, 1
      %p245 = scmp.ne.s32.totalorder %s240, %s242
      %p246 = scmp.eq.s32.totalorder %s28, 0
      %p247 = por %p245, %p246
      %p248 = scmp.ne.s32.totalorder %s240, %s242
      %p249 = scmp.eq.s32.totalorder %s33, 1
      %p250 = por %p248, %p249
      %p251 = scmp.ne.s32.totalorder %s242, %s243
      %p252 = scmp.eq.s32.totalorder %s33, 0
      %p253 = por %p251, %p252
      %p254 = scmp.ne.s32.totalorder %s242, %s243
      %p255 = scmp.eq.s32.totalorder %s34, 1
      %p256 = por %p254, %p255
      %p258 = scmp.ne.s32.totalorder %s243, %s257
      %p259 = scmp.eq.s32.totalorder %s34, 0
      %p260 = por %p258, %p259
      %s262 = sadd.s32 %s261, 1
      %p265 = scmp.eq.s32.totalorder %s28, 1
      %p266 = scmp.ne.s32.totalorder %s261, %s263
      %p267 = scmp.eq.s32.totalorder %s28, 0
      %p268 = por %p266, %p267
      %p269 = scmp.ne.s32.totalorder %s261, %s263
      %p270 = scmp.eq.s32.totalorder %s33, 1
      %p271 = por %p269, %p270
      %p272 = scmp.ne.s32.totalorder %s263, %s264
      %p273 = scmp.eq.s32.totalorder %s33, 0
      %p274 = por %p272, %p273
      %p275 = scmp.ne.s32.totalorder %s263, %s264
      %p276 = scmp.eq.s32.totalorder %s34, 1
      %p277 = por %p275, %p276
      %p279 = scmp.ne.s32.totalorder %s264, %s278
      %p280 = scmp.eq.s32.totalorder %s34, 0
      %p281 = por %p279, %p280
      %s282 = ssub.s32 %s28, %s35
      %p283 = scmp.eq.s32.totalorder %s282, 0
      %s285 = sadd.s32 %s284, 1
      %s286 = scalar_select %p283, %s284, %s285
      %p289 = pneg %p283
      %p290 = scmp.eq.s32.totalorder %s28, 1
      %p291 = por %p289, %p290
      %p292 = scmp.ne.s32.totalorder %s284, %s287
      %p293 = scmp.eq.s32.totalorder %s28, 0
      %p294 = por %p292, %p293
      %p295 = scmp.ne.s32.totalorder %s284, %s287
      %p296 = scmp.eq.s32.totalorder %s33, 1
      %p297 = por %p295, %p296
      %p298 = scmp.ne.s32.totalorder %s287, %s288
      %p299 = scmp.eq.s32.totalorder %s33, 0
      %p300 = por %p298, %p299
      %p301 = scmp.ne.s32.totalorder %s287, %s288
      %p302 = scmp.eq.s32.totalorder %s34, 1
      %p303 = por %p301, %p302
      %p305 = scmp.ne.s32.totalorder %s288, %s304
      %p306 = scmp.eq.s32.totalorder %s34, 0
      %p307 = por %p305, %p306
      %p308 = scmp.le.s32.totalorder 1, %s28
      %p309 = scmp.lt.s32.totalorder %s28, 3
      %p310 = pnand %p308, %p309
      %p311 = pneg %p310
      // Predicated region
      $region9: #{tpu_custom_call.1} parent=5 // pred_check
        _
      $region10: #{tpu_custom_call.1} parent=5 // pred_check_branch
        %313 = sbr.rel (%p310) target = $region12
      $region11: #{tpu_custom_call.1} parent=5 // pred_region
        %s314 = ssub.s32 %s28, 1
        // Predicated region
        $region13: #{tpu_custom_call.1} parent=11 // pred_check
          %p315 = pneg %p127
        $region14: #{tpu_custom_call.1} parent=11 // pred_check_branch
          %317 = sbr.rel (%p315) target = $region16
        $region15: #{tpu_custom_call.1} parent=11 // pred_region
          %s319 = ssub.s32 256, 256
          %320 = vsyncadd [#allocation9], %s319
          %s321 = sshll.u32 [#allocation8], 4
          %s322 = int_to_ptr.vmem [resolvable:$true] %s321
          %327 = dma.hbm_to_vmem [thread:$0]  %s3, 256, %s322, [#allocation9], 64, 64, 4
        $region16: #{tpu_custom_call.1} parent=11 // pred_fallthru
          _
        // Predicated region
        $region17: #{tpu_custom_call.1} parent=11 // pred_check
          %p328 = pneg %p148
        $region18: #{tpu_custom_call.1} parent=11 // pred_check_branch
          %330 = sbr.rel (%p328) target = $region20
        $region19: #{tpu_custom_call.1} parent=11 // pred_region
          _
        $region20: #{tpu_custom_call.1} parent=11 // pred_fallthru
          _
        // Predicated region
        $region21: #{tpu_custom_call.1} parent=11 // pred_check
          %p331 = pneg %p169
        $region22: #{tpu_custom_call.1} parent=11 // pred_check_branch
          %333 = sbr.rel (%p331) target = $region24
        $region23: #{tpu_custom_call.1} parent=11 // pred_region
          _
        $region24: #{tpu_custom_call.1} parent=11 // pred_fallthru
          _
        // Predicated region
        $region25: #{tpu_custom_call.1} parent=11 // pred_check
          %p334 = pneg %p190
        $region26: #{tpu_custom_call.1} parent=11 // pred_check_branch
          %336 = sbr.rel (%p334) target = $region28
        $region27: #{tpu_custom_call.1} parent=11 // pred_region
          _
        $region28: #{tpu_custom_call.1} parent=11 // pred_fallthru
          _
        // Predicated region
        $region29: #{tpu_custom_call.1} parent=11 // pred_check
          %p337 = pneg %p211
        $region30: #{tpu_custom_call.1} parent=11 // pred_check_branch
          %339 = sbr.rel (%p337) target = $region32
        $region31: #{tpu_custom_call.1} parent=11 // pred_region
          %s341 = ssub.s32 256, 256
          %342 = vsyncadd [#allocation9], %s341
          %s343 = sshll.u32 [#allocation10], 4
          %s344 = int_to_ptr.vmem [resolvable:$true] %s343
          %349 = dma.hbm_to_vmem [thread:$0]  %s7, 256, %s344, [#allocation9], 64, 64, 4
        $region32: #{tpu_custom_call.1} parent=11 // pred_fallthru
          _
        // Predicated region
        $region33: #{tpu_custom_call.1} parent=11 // pred_check
          %p350 = pneg %p232
        $region34: #{tpu_custom_call.1} parent=11 // pred_check_branch
          %352 = sbr.rel (%p350) target = $region36
        $region35: #{tpu_custom_call.1} parent=11 // pred_region
          %s354 = ssub.s32 16, 16
          %355 = vsyncadd [#allocation12], %s354
          %s357 = sshll.u32 [#allocation11], 4
          %s358 = int_to_ptr.vmem [resolvable:$true] %s357
          %360 = dma.hbm_to_vmem [thread:$0]  %s8, 16, %s358, [#allocation12]
        $region36: #{tpu_custom_call.1} parent=11 // pred_fallthru
          _
        // Predicated region
        $region37: #{tpu_custom_call.1} parent=11 // pred_check
          %p361 = pneg %p253
        $region38: #{tpu_custom_call.1} parent=11 // pred_check_branch
          %363 = sbr.rel (%p361) target = $region40
        $region39: #{tpu_custom_call.1} parent=11 // pred_region
          _
        $region40: #{tpu_custom_call.1} parent=11 // pred_fallthru
          _
        // Predicated region
        $region41: #{tpu_custom_call.1} parent=11 // pred_check
          %p364 = pneg %p274
        $region42: #{tpu_custom_call.1} parent=11 // pred_check_branch
          %366 = sbr.rel (%p364) target = $region44
        $region43: #{tpu_custom_call.1} parent=11 // pred_region
          _
        $region44: #{tpu_custom_call.1} parent=11 // pred_fallthru
          _
      $region12: #{tpu_custom_call.1} parent=5 // pred_fallthru
        _
      %p367 = scmp.lt.s32.totalorder %s28, 2
      // Predicated region
      $region45: #{tpu_custom_call.1} parent=5 // pred_check
        %p368 = pneg %p367
      $region46: #{tpu_custom_call.1} parent=5 // pred_check_branch
        %370 = sbr.rel (%p368) target = $region48
      $region47: #{tpu_custom_call.1} parent=5 // pred_region
        // Predicated region
        $region49: #{tpu_custom_call.1} parent=47 // pred_check
          %p371 = pneg %p48
        $region50: #{tpu_custom_call.1} parent=47 // pred_check_branch
          %373 = sbr.rel (%p371) target = $region52
        $region51: #{tpu_custom_call.1} parent=47 // pred_region
          %s374 = sand.u32 %s38, 1
          %s375 = scalar_lea.sflag [#allocation3], %s374
          %s376 = sand.u32 %s38, 1
          %s377 = smul.addr %s376, 8
          %s378 = scalar_lea.vmem [#allocation2], %s377
          %s380 = ssub.s32 128, 128
          %381 = vsyncadd %s375, %s380
          %s382 = smul.addr %s28, 128
          %s383 = scalar_lea.hbm %s0, %s382
          %s385 = sshll.u32 %s378, 4
          %s386 = int_to_ptr.vmem [resolvable:$true] %s385
          %388 = dma.hbm_to_vmem [thread:$0]  %s383, 128, %s386, %s375
        $region52: #{tpu_custom_call.1} parent=47 // pred_fallthru
          _
        // Predicated region
        $region53: #{tpu_custom_call.1} parent=47 // pred_check
          %p389 = pneg %p74
        $region54: #{tpu_custom_call.1} parent=47 // pred_check_branch
          %391 = sbr.rel (%p389) target = $region56
        $region55: #{tpu_custom_call.1} parent=47 // pred_region
          %s392 = sand.u32 %s28, 1
          %s393 = scalar_lea.sflag [#allocation6], %s392
          %s394 = sand.u32 %s64, 1
          %s395 = smul.addr %s394, 8
          %s396 = scalar_lea.vmem [#allocation5], %s395
          %s398 = ssub.s32 128, 128
          %399 = vsyncadd %s393, %s398
          %s400 = smul.addr %s28, 128
          %s401 = scalar_lea.hbm %s1, %s400
          %s403 = sshll.u32 %s396, 4
          %s404 = int_to_ptr.vmem [resolvable:$true] %s403
          %406 = dma.hbm_to_vmem [thread:$0]  %s401, 128, %s404, %s393
        $region56: #{tpu_custom_call.1} parent=47 // pred_fallthru
          _
        // Predicated region
        $region57: #{tpu_custom_call.1} parent=47 // pred_check
          %p407 = pneg %p100
        $region58: #{tpu_custom_call.1} parent=47 // pred_check_branch
          %409 = sbr.rel (%p407) target = $region60
        $region59: #{tpu_custom_call.1} parent=47 // pred_region
          %s410 = sand.u32 %s28, 1
          %s411 = scalar_lea.sflag [#allocation6], %s410
          %s412 = sand.u32 %s90, 1
          %s413 = smul.addr %s412, 8
          %s414 = scalar_lea.vmem [#allocation7], %s413
          %s416 = ssub.s32 128, 128
          %417 = vsyncadd %s411, %s416
          %s418 = smul.addr %s28, 128
          %s419 = scalar_lea.hbm %s2, %s418
          %s421 = sshll.u32 %s414, 4
          %s422 = int_to_ptr.vmem [resolvable:$true] %s421
          %424 = dma.hbm_to_vmem [thread:$0]  %s419, 128, %s422, %s411
        $region60: #{tpu_custom_call.1} parent=47 // pred_fallthru
          _
      $region48: #{tpu_custom_call.1} parent=5 // pred_fallthru
        _
      %p425 = scmp.le.s32.totalorder 1, %s28
      %p426 = scmp.lt.s32.totalorder %s28, 3
      %p427 = pnand %p425, %p426
      %p428 = pneg %p427
      // Predicated region
      $region61: #{tpu_custom_call.1} parent=5 // pred_check
        _
      $region62: #{tpu_custom_call.1} parent=5 // pred_check_branch
        %430 = sbr.rel (%p427) target = $region64
      $region63: #{tpu_custom_call.1} parent=5 // pred_region
        %s431 = ssub.s32 %s28, 1
        %s432 = sand.u32 %s41, 1
        %s433 = scalar_lea.sflag [#allocation3], %s432
        %s434 = sand.u32 %s41, 1
        %s435 = smul.addr %s434, 8
        %s436 = scalar_lea.vmem [#allocation2], %s435
        // Predicated region
        $region65: #{tpu_custom_call.1} parent=63 // pred_check
          %p437 = pneg %p54
        $region66: #{tpu_custom_call.1} parent=63 // pred_check_branch
          %439 = sbr.rel (%p437) target = $region68
        $region67: #{tpu_custom_call.1} parent=63 // pred_region
          %440 = dma.done %s433, 128
        $region68: #{tpu_custom_call.1} parent=63 // pred_fallthru
          _
        %s441 = sand.u32 %s33, 1
        %s442 = scalar_lea.sflag [#allocation6], %s441
        %s443 = sand.u32 %s67, 1
        %s444 = smul.addr %s443, 8
        %s445 = scalar_lea.vmem [#allocation5], %s444
        // Predicated region
        $region69: #{tpu_custom_call.1} parent=63 // pred_check
          %p446 = pneg %p80
        $region70: #{tpu_custom_call.1} parent=63 // pred_check_branch
          %448 = sbr.rel (%p446) target = $region72
        $region71: #{tpu_custom_call.1} parent=63 // pred_region
          %449 = dma.done %s442, 128
        $region72: #{tpu_custom_call.1} parent=63 // pred_fallthru
          _
        %s450 = sand.u32 %s33, 1
        %s451 = scalar_lea.sflag [#allocation6], %s450
        %s452 = sand.u32 %s93, 1
        %s453 = smul.addr %s452, 8
        %s454 = scalar_lea.vmem [#allocation7], %s453
        // Predicated region
        $region73: #{tpu_custom_call.1} parent=63 // pred_check
          %p455 = pneg %p106
        $region74: #{tpu_custom_call.1} parent=63 // pred_check_branch
          %457 = sbr.rel (%p455) target = $region76
        $region75: #{tpu_custom_call.1} parent=63 // pred_region
          %458 = dma.done %s451, 128
        $region76: #{tpu_custom_call.1} parent=63 // pred_fallthru
          _
        // Predicated region
        $region77: #{tpu_custom_call.1} parent=63 // pred_check
          %p459 = pneg %p127
        $region78: #{tpu_custom_call.1} parent=63 // pred_check_branch
          %461 = sbr.rel (%p459) target = $region80
        $region79: #{tpu_custom_call.1} parent=63 // pred_region
          %462 = dma.done [#allocation9], 256
        $region80: #{tpu_custom_call.1} parent=63 // pred_fallthru
          _
        // Predicated region
        $region81: #{tpu_custom_call.1} parent=63 // pred_check
          %p463 = pneg %p211
        $region82: #{tpu_custom_call.1} parent=63 // pred_check_branch
          %465 = sbr.rel (%p463) target = $region84
        $region83: #{tpu_custom_call.1} parent=63 // pred_region
          %466 = dma.done [#allocation9], 256
        $region84: #{tpu_custom_call.1} parent=63 // pred_fallthru
          _
        // Predicated region
        $region85: #{tpu_custom_call.1} parent=63 // pred_check
          %p467 = pneg %p232
        $region86: #{tpu_custom_call.1} parent=63 // pred_check_branch
          %469 = sbr.rel (%p467) target = $region88
        $region87: #{tpu_custom_call.1} parent=63 // pred_region
          %470 = dma.done [#allocation12], 16
        $region88: #{tpu_custom_call.1} parent=63 // pred_fallthru
          _
        %s471 = sand.u32 %s41, 1
        %s472 = scalar_lea.sflag [#allocation3], %s471
        %s473 = sand.u32 %s41, 1
        %s474 = smul.addr %s473, 8
        %s475 = scalar_lea.vmem [#allocation2], %s474
        %p476 = pneg %p54
        %p477 = pneg %p51
        %s478 = sand.u32 %s33, 1
        %s479 = scalar_lea.sflag [#allocation6], %s478
        %s480 = sand.u32 %s67, 1
        %s481 = smul.addr %s480, 8
        %s482 = scalar_lea.vmem [#allocation5], %s481
        %p483 = pneg %p80
        %p484 = pneg %p77
        %s485 = sand.u32 %s33, 1
        %s486 = scalar_lea.sflag [#allocation6], %s485
        %s487 = sand.u32 %s93, 1
        %s488 = smul.addr %s487, 8
        %s489 = scalar_lea.vmem [#allocation7], %s488
        %p490 = pneg %p106
        %p491 = pneg %p103
        %p492 = pneg %p127
        %p493 = pneg %p124
        %p494 = pneg %p148
        %p495 = pneg %p145
        %p496 = pneg %p169
        %p497 = pneg %p166
        %p498 = pneg %p190
        %p499 = pneg %p187
        %p500 = pneg %p211
        %p501 = pneg %p208
        %p502 = pneg %p232
        %p503 = pneg %p229
        %p504 = pneg %p253
        %p505 = pneg %p250
        %p506 = pneg %p274
        %p507 = pneg %p271
        %p508 = pneg %p300
        %p509 = pneg %p297
        %s510 = sand.u32 %s287, 1
        %s511 = scalar_lea.sflag [#allocation4], %s510
        %s512 = sand.u32 %s287, 1
        %s513 = smul.addr %s512, 8
        %s514 = scalar_lea.vmem [#allocation13], %s513
        %v516 = vld [vmem:[%s436] sm:$0xff]
        %v517 = vpack.c.bf16 %v516, %v516
        %v518 = vld [vmem:[#allocation8] sm:$0xf]
        %v519 = vld [vmem:[#allocation8 + $0x4] sm:$0xf]
        %v520 = vld [vmem:[#allocation8 + $0x8] sm:$0xf]
        %v521 = vld [vmem:[#allocation8 + $0xc] sm:$0xf]
        %v522 = vld [vmem:[%s4] sm:$0x1]
        %v524 = vlaneseq
        %v525 = vshrl.u32 %v524, 7
        %v526 = vsub.s32 0, %v525
        %v527 = vrot.slane %v522, %v526
        %v533 = vunpack.c.l.b16 %v518
        %v534 = vunpack.c.l.b16 %v519
        %v535 = vunpack.c.l.b16 %v520
        %v536 = vunpack.c.l.b16 %v521
        %v537 = vpack.c.b16 %v534, %v533
        %v538 = vpack.c.b16 %v536, %v535
        %vm539 = vcmask 261120
        %v541 = vsel %vm539, %v517, 0
        %v544 = vsel %vm539, %v537, 0
        %v547 = vsel %vm539, %v538, 0
        %549 = vmatprep.subr.bf16.mxu0 0
        %550 = vmatpush1.bf16.xpose.msra.mxu0 %v544
        %551 = vmatprep.subr.bf16.mxu0 0
        %552 = vmatpush1.bf16.xpose.msra.mxu0 %v547
        %553 = vmatprep.subr.bf16.mxu0 0
        %554 = vmatpush1.bf16.xpose.msra.mxu0 0
        %555 = vmatprep.subr.bf16.mxu0 0
        %556 = vmatpush1.bf16.xpose.msra.mxu0 0
        %557 = vmatprep.subr.bf16.mxu0 0
        %558 = vmatpush1.bf16.xpose.msra.mxu0 0
        %559 = vmatprep.subr.bf16.mxu0 0
        %560 = vmatpush1.bf16.xpose.msra.mxu0 0
        %561 = vmatprep.subr.bf16.mxu0 0
        %562 = vmatpush1.bf16.xpose.msra.mxu0 0
        %563 = vmatprep.subr.bf16.mxu0 0
        %564 = vmatpush1.bf16.xpose.msra.mxu0 0
        %565 = vmatprep.subr.bf16.mxu0 0
        %566 = vmatpush1.bf16.xpose.msra.mxu0 0
        %567 = vmatprep.subr.bf16.mxu0 0
        %568 = vmatpush1.bf16.xpose.msra.mxu0 0
        %569 = vmatprep.subr.bf16.mxu0 0
        %570 = vmatpush1.bf16.xpose.msra.mxu0 0
        %571 = vmatprep.subr.bf16.mxu0 0
        %572 = vmatpush1.bf16.xpose.msra.mxu0 0
        %573 = vmatprep.subr.bf16.mxu0 0
        %574 = vmatpush1.bf16.xpose.msra.mxu0 0
        %575 = vmatprep.subr.bf16.mxu0 0
        %576 = vmatpush1.bf16.xpose.msra.mxu0 0
        %577 = vmatprep.subr.bf16.mxu0 0
        %578 = vmatpush1.bf16.xpose.msra.mxu0 0
        %579 = vmatprep.subr.bf16.mxu0 0
        %580 = vmatpush1.bf16.xpose.msra.mxu0 0
        %581 = vmatprep.mubr.bf16.mxu0 0
        %582 = vmatmul.mubr.bf16.gmra.mrb[0].mxu0 %v541
        %v583 = vpop.f32.mrb[0].mxu0
        %v584 = vadd.f32 %v527, %v583
        %v585 = vpop.f32.mrb[0].mxu0
        %v586 = vpop.f32.mrb[0].mxu0
        %v587 = vpop.f32.mrb[0].mxu0
        %588 = vdwg.mxu0
        %v589 = vld [vmem:[%s445] sm:$0xff]
        %v590 = vpack.c.bf16 %v589, %v589
        %v591 = vld [vmem:[%s5] sm:$0xf]
        %v592 = vld [vmem:[%s5 + $0x4] sm:$0xf]
        %v593 = vld [vmem:[%s5 + $0x8] sm:$0xf]
        %v594 = vld [vmem:[%s5 + $0xc] sm:$0xf]
        %v595 = vld [vmem:[%s6] sm:$0x1]
        %v597 = vlaneseq
        %v598 = vshrl.u32 %v597, 7
        %v599 = vsub.s32 0, %v598
        %v600 = vrot.slane %v595, %v599
        %v606 = vunpack.c.l.b16 %v591
        %v607 = vunpack.c.l.b16 %v592
        %v608 = vunpack.c.l.b16 %v593
        %v609 = vunpack.c.l.b16 %v594
        %v610 = vpack.c.b16 %v607, %v606
        %v611 = vpack.c.b16 %v609, %v608
        %v613 = vsel %vm539, %v590, 0
        %v616 = vsel %vm539, %v610, 0
        %v619 = vsel %vm539, %v611, 0
        %621 = vmatprep.subr.bf16.mxu0 0
        %622 = vmatpush1.bf16.xpose.msra.mxu0 %v616
        %623 = vmatprep.subr.bf16.mxu0 0
        %624 = vmatpush1.bf16.xpose.msra.mxu0 %v619
        %625 = vmatprep.subr.bf16.mxu0 0
        %626 = vmatpush1.bf16.xpose.msra.mxu0 0
        %627 = vmatprep.subr.bf16.mxu0 0
        %628 = vmatpush1.bf16.xpose.msra.mxu0 0
        %629 = vmatprep.subr.bf16.mxu0 0
        %630 = vmatpush1.bf16.xpose.msra.mxu0 0
        %631 = vmatprep.subr.bf16.mxu0 0
        %632 = vmatpush1.bf16.xpose.msra.mxu0 0
        %633 = vmatprep.subr.bf16.mxu0 0
        %634 = vmatpush1.bf16.xpose.msra.mxu0 0
        %635 = vmatprep.subr.bf16.mxu0 0
        %636 = vmatpush1.bf16.xpose.msra.mxu0 0
        %637 = vmatprep.subr.bf16.mxu0 0
        %638 = vmatpush1.bf16.xpose.msra.mxu0 0
        %639 = vmatprep.subr.bf16.mxu0 0
        %640 = vmatpush1.bf16.xpose.msra.mxu0 0
        %641 = vmatprep.subr.bf16.mxu0 0
        %642 = vmatpush1.bf16.xpose.msra.mxu0 0
        %643 = vmatprep.subr.bf16.mxu0 0
        %644 = vmatpush1.bf16.xpose.msra.mxu0 0
        %645 = vmatprep.subr.bf16.mxu0 0
        %646 = vmatpush1.bf16.xpose.msra.mxu0 0
        %647 = vmatprep.subr.bf16.mxu0 0
        %648 = vmatpush1.bf16.xpose.msra.mxu0 0
        %649 = vmatprep.subr.bf16.mxu0 0
        %650 = vmatpush1.bf16.xpose.msra.mxu0 0
        %651 = vmatprep.subr.bf16.mxu0 0
        %652 = vmatpush1.bf16.xpose.msra.mxu0 0
        %653 = vmatprep.mubr.bf16.mxu0 0
        %654 = vmatmul.mubr.bf16.gmra.mrb[0].mxu0 %v613
        %v655 = vpop.f32.mrb[0].mxu0
        %v656 = vadd.f32 %v600, %v655
        %v657 = vpop.f32.mrb[0].mxu0
        %v658 = vpop.f32.mrb[0].mxu0
        %v659 = vpop.f32.mrb[0].mxu0
        %660 = vdwg.mxu0
        %v661 = vld [vmem:[%s454] sm:$0xff]
        %v662 = vpack.c.bf16 %v661, %v661
        %v663 = vld [vmem:[#allocation10] sm:$0xf]
        %v664 = vld [vmem:[#allocation10 + $0x4] sm:$0xf]
        %v665 = vld [vmem:[#allocation10 + $0x8] sm:$0xf]
        %v666 = vld [vmem:[#allocation10 + $0xc] sm:$0xf]
        %v667 = vld [vmem:[#allocation11] sm:$0x1]
        %v669 = vlaneseq
        %v670 = vshrl.u32 %v669, 7
        %v671 = vsub.s32 0, %v670
        %v672 = vrot.slane %v667, %v671
        %v678 = vunpack.c.l.b16 %v663
        %v679 = vunpack.c.l.b16 %v664
        %v680 = vunpack.c.l.b16 %v665
        %v681 = vunpack.c.l.b16 %v666
        %v682 = vpack.c.b16 %v679, %v678
        %v683 = vpack.c.b16 %v681, %v680
        %v685 = vsel %vm539, %v662, 0
        %v688 = vsel %vm539, %v682, 0
        %v691 = vsel %vm539, %v683, 0
        %693 = vmatprep.subr.bf16.mxu0 0
        %694 = vmatpush1.bf16.xpose.msra.mxu0 %v688
        %695 = vmatprep.subr.bf16.mxu0 0
        %696 = vmatpush1.bf16.xpose.msra.mxu0 %v691
        %697 = vmatprep.subr.bf16.mxu0 0
        %698 = vmatpush1.bf16.xpose.msra.mxu0 0
        %699 = vmatprep.subr.bf16.mxu0 0
        %700 = vmatpush1.bf16.xpose.msra.mxu0 0
        %701 = vmatprep.subr.bf16.mxu0 0
        %702 = vmatpush1.bf16.xpose.msra.mxu0 0
        %703 = vmatprep.subr.bf16.mxu0 0
        %704 = vmatpush1.bf16.xpose.msra.mxu0 0
        %705 = vmatprep.subr.bf16.mxu0 0
        %706 = vmatpush1.bf16.xpose.msra.mxu0 0
        %707 = vmatprep.subr.bf16.mxu0 0
        %708 = vmatpush1.bf16.xpose.msra.mxu0 0
        %709 = vmatprep.subr.bf16.mxu0 0
        %710 = vmatpush1.bf16.xpose.msra.mxu0 0
        %711 = vmatprep.subr.bf16.mxu0 0
        %712 = vmatpush1.bf16.xpose.msra.mxu0 0
        %713 = vmatprep.subr.bf16.mxu0 0
        %714 = vmatpush1.bf16.xpose.msra.mxu0 0
        %715 = vmatprep.subr.bf16.mxu0 0
        %716 = vmatpush1.bf16.xpose.msra.mxu0 0
        %717 = vmatprep.subr.bf16.mxu0 0
        %718 = vmatpush1.bf16.xpose.msra.mxu0 0
        %719 = vmatprep.subr.bf16.mxu0 0
        %720 = vmatpush1.bf16.xpose.msra.mxu0 0
        %721 = vmatprep.subr.bf16.mxu0 0
        %722 = vmatpush1.bf16.xpose.msra.mxu0 0
        %723 = vmatprep.subr.bf16.mxu0 0
        %724 = vmatpush1.bf16.xpose.msra.mxu0 0
        %725 = vmatprep.mubr.bf16.mxu0 0
        %726 = vmatmul.mubr.bf16.gmra.mrb[0].mxu0 %v685
        %v727 = vpop.f32.mrb[0].mxu0
        %v728 = vadd.f32 %v672, %v727
        %v729 = vpop.f32.mrb[0].mxu0
        %v730 = vpop.f32.mrb[0].mxu0
        %v731 = vpop.f32.mrb[0].mxu0
        %732 = vdwg.mxu0
        %v733 = vpack.c.bf16 %v584, %v584
        %v734 = vpack.c.bf16 %v656, %v656
        %v735 = vpack.c.bf16 %v728, %v728
        %v736 = vlaneseq
        %v737 = vshrl.u32 %v736, 7
        %v738 = vlaneseq
        %v739 = vand.u32 %v738, 127
        %vm740 = vcmp.le.s32.totalorder %v739, %v737
        %vm741 = vcmask 64512
        %v743 = vsel %vm741, %v733, 0
        %v746 = vsel %vm741, %v734, 0
        %748 = vmatprep.subr.bf16.mxu0 0
        %749 = vmatpush1.bf16.xpose.msra.mxu0 %v746
        %750 = vmatprep.subr.bf16.mxu0 0
        %751 = vmatpush1.bf16.xpose.msra.mxu0 0
        %752 = vmatprep.subr.bf16.mxu0 0
        %753 = vmatpush1.bf16.xpose.msra.mxu0 0
        %754 = vmatprep.subr.bf16.mxu0 0
        %755 = vmatpush1.bf16.xpose.msra.mxu0 0
        %756 = vmatprep.subr.bf16.mxu0 0
        %757 = vmatpush1.bf16.xpose.msra.mxu0 0
        %758 = vmatprep.subr.bf16.mxu0 0
        %759 = vmatpush1.bf16.xpose.msra.mxu0 0
        %760 = vmatprep.subr.bf16.mxu0 0
        %761 = vmatpush1.bf16.xpose.msra.mxu0 0
        %762 = vmatprep.subr.bf16.mxu0 0
        %763 = vmatpush1.bf16.xpose.msra.mxu0 0
        %764 = vmatprep.subr.bf16.mxu0 0
        %765 = vmatpush1.bf16.xpose.msra.mxu0 0
        %766 = vmatprep.subr.bf16.mxu0 0
        %767 = vmatpush1.bf16.xpose.msra.mxu0 0
        %768 = vmatprep.subr.bf16.mxu0 0
        %769 = vmatpush1.bf16.xpose.msra.mxu0 0
        %770 = vmatprep.subr.bf16.mxu0 0
        %771 = vmatpush1.bf16.xpose.msra.mxu0 0
        %772 = vmatprep.subr.bf16.mxu0 0
        %773 = vmatpush1.bf16.xpose.msra.mxu0 0
        %774 = vmatprep.subr.bf16.mxu0 0
        %775 = vmatpush1.bf16.xpose.msra.mxu0 0
        %776 = vmatprep.subr.bf16.mxu0 0
        %777 = vmatpush1.bf16.xpose.msra.mxu0 0
        %778 = vmatprep.subr.bf16.mxu0 0
        %779 = vmatpush1.bf16.xpose.msra.mxu0 0
        %780 = vmatprep.mubr.bf16.mxu0 0
        %781 = vmatmul.mubr.bf16.gmra.mrb[0].mxu0 %v743
        %v782 = vpop.f32.mrb[0].mxu0
        %v783 = vadd.f32 0.0, %v782
        %v784 = vpop.f32.mrb[0].mxu0
        %v785 = vpop.f32.mrb[0].mxu0
        %v786 = vpop.f32.mrb[0].mxu0
        %787 = vdwg.mxu0
        %v788 = vsel %vm740, %v783, -1e+30
        %v789 = vsel %vm741, %v788, -inf
        %790 = vmax.xlane.f32.xlu0 %v789
        %v791 = vpop.xlane.xlu0 %790
        %v792 = vsub.f32 %v788, %v791
        %v793 = vmul.f32 %v792, 1.442695
        %v794 = vpow.pop %v793
        %v795 = vsel %vm741, %v794, 0.0
        %796 = vadd.xlane.f32.xlu0 %v795
        %v797 = vpop.xlane.xlu0 %796
        %v798 = vpack.c.bf16 %v794, %v794
        %v800 = vsel %vm741, %v798, 0
        %vm802 = vcmask 1043456
        %v804 = vsel %vm802, %v735, 0
        %806 = vmatprep.subr.bf16.mxu0 0
        %807 = vmatpush1.bf16.msra.mxu0 %v804
        %808 = vmatprep.subr.bf16.mxu0 0
        %809 = vmatpush1.bf16.msra.mxu0 0
        %810 = vmatprep.subr.bf16.mxu0 0
        %811 = vmatpush1.bf16.msra.mxu0 0
        %812 = vmatprep.subr.bf16.mxu0 0
        %813 = vmatpush1.bf16.msra.mxu0 0
        %814 = vmatprep.subr.bf16.mxu0 0
        %815 = vmatpush1.bf16.msra.mxu0 0
        %816 = vmatprep.subr.bf16.mxu0 0
        %817 = vmatpush1.bf16.msra.mxu0 0
        %818 = vmatprep.subr.bf16.mxu0 0
        %819 = vmatpush1.bf16.msra.mxu0 0
        %820 = vmatprep.subr.bf16.mxu0 0
        %821 = vmatpush1.bf16.msra.mxu0 0
        %822 = vmatprep.subr.bf16.mxu0 0
        %823 = vmatpush1.bf16.msra.mxu0 0
        %824 = vmatprep.subr.bf16.mxu0 0
        %825 = vmatpush1.bf16.msra.mxu0 0
        %826 = vmatprep.subr.bf16.mxu0 0
        %827 = vmatpush1.bf16.msra.mxu0 0
        %828 = vmatprep.subr.bf16.mxu0 0
        %829 = vmatpush1.bf16.msra.mxu0 0
        %830 = vmatprep.subr.bf16.mxu0 0
        %831 = vmatpush1.bf16.msra.mxu0 0
        %832 = vmatprep.subr.bf16.mxu0 0
        %833 = vmatpush1.bf16.msra.mxu0 0
        %834 = vmatprep.subr.bf16.mxu0 0
        %835 = vmatpush1.bf16.msra.mxu0 0
        %836 = vmatprep.subr.bf16.mxu0 0
        %837 = vmatpush1.bf16.msra.mxu0 0
        %838 = vmatprep.mubr.bf16.mxu0 0
        %839 = vmatmul.mubr.bf16.gmra.mrb[0].mxu0 %v800
        %v840 = vpop.f32.mrb[0].mxu0
        %v841 = vadd.f32 0.0, %v840
        %v842 = vpop.f32.mrb[0].mxu0
        %v843 = vpop.f32.mrb[0].mxu0
        %v844 = vpop.f32.mrb[0].mxu0
        %845 = vdwg.mxu0
        %v846 = vrcp.pop %v797
        %v847 = vmul.f32 %v841, %v846
        %849 = vrot.lane.b32.xlu0 %v733, 120
        %v850 = vpop.permute.xlu0 %849
        %852 = vrot.lane.b32.xlu0 %v734, 120
        %v853 = vpop.permute.xlu0 %852
        %v855 = vsel %vm741, %v850, 0
        %v858 = vsel %vm741, %v853, 0
        %860 = vmatprep.subr.bf16.mxu0 0
        %861 = vmatpush1.bf16.xpose.msra.mxu0 %v858
        %862 = vmatprep.subr.bf16.mxu0 0
        %863 = vmatpush1.bf16.xpose.msra.mxu0 0
        %864 = vmatprep.subr.bf16.mxu0 0
        %865 = vmatpush1.bf16.xpose.msra.mxu0 0
        %866 = vmatprep.subr.bf16.mxu0 0
        %867 = vmatpush1.bf16.xpose.msra.mxu0 0
        %868 = vmatprep.subr.bf16.mxu0 0
        %869 = vmatpush1.bf16.xpose.msra.mxu0 0
        %870 = vmatprep.subr.bf16.mxu0 0
        %871 = vmatpush1.bf16.xpose.msra.mxu0 0
        %872 = vmatprep.subr.bf16.mxu0 0
        %873 = vmatpush1.bf16.xpose.msra.mxu0 0
        %874 = vmatprep.subr.bf16.mxu0 0
        %875 = vmatpush1.bf16.xpose.msra.mxu0 0
        %876 = vmatprep.subr.bf16.mxu0 0
        %877 = vmatpush1.bf16.xpose.msra.mxu0 0
        %878 = vmatprep.subr.bf16.mxu0 0
        %879 = vmatpush1.bf16.xpose.msra.mxu0 0
        %880 = vmatprep.subr.bf16.mxu0 0
        %881 = vmatpush1.bf16.xpose.msra.mxu0 0
        %882 = vmatprep.subr.bf16.mxu0 0
        %883 = vmatpush1.bf16.xpose.msra.mxu0 0
        %884 = vmatprep.subr.bf16.mxu0 0
        %885 = vmatpush1.bf16.xpose.msra.mxu0 0
        %886 = vmatprep.subr.bf16.mxu0 0
        %887 = vmatpush1.bf16.xpose.msra.mxu0 0
        %888 = vmatprep.subr.bf16.mxu0 0
        %889 = vmatpush1.bf16.xpose.msra.mxu0 0
        %890 = vmatprep.subr.bf16.mxu0 0
        %891 = vmatpush1.bf16.xpose.msra.mxu0 0
        %892 = vmatprep.mubr.bf16.mxu0 0
        %893 = vmatmul.mubr.bf16.gmra.mrb[0].mxu0 %v855
        %v894 = vpop.f32.mrb[0].mxu0
        %v895 = vadd.f32 0.0, %v894
        %v896 = vpop.f32.mrb[0].mxu0
        %v897 = vpop.f32.mrb[0].mxu0
        %v898 = vpop.f32.mrb[0].mxu0
        %899 = vdwg.mxu0
        %v900 = vsel %vm740, %v895, -1e+30
        %v901 = vsel %vm741, %v900, -inf
        %902 = vmax.xlane.f32.xlu0 %v901
        %v903 = vpop.xlane.xlu0 %902
        %v904 = vsub.f32 %v900, %v903
        %v905 = vmul.f32 %v904, 1.442695
        %v906 = vpow.pop %v905
        %v907 = vsel %vm741, %v906, 0.0
        %908 = vadd.xlane.f32.xlu0 %v907
        %v909 = vpop.xlane.xlu0 %908
        %v910 = vpack.c.bf16 %v906, %v906
        %912 = vrot.lane.b32.xlu0 %v735, 120
        %v913 = vpop.permute.xlu0 %912
        %v915 = vsel %vm741, %v910, 0
        %v918 = vsel %vm802, %v913, 0
        %920 = vmatprep.subr.bf16.mxu0 0
        %921 = vmatpush1.bf16.msra.mxu0 %v918
        %922 = vmatprep.subr.bf16.mxu0 0
        %923 = vmatpush1.bf16.msra.mxu0 0
        %924 = vmatprep.subr.bf16.mxu0 0
        %925 = vmatpush1.bf16.msra.mxu0 0
        %926 = vmatprep.subr.bf16.mxu0 0
        %927 = vmatpush1.bf16.msra.mxu0 0
        %928 = vmatprep.subr.bf16.mxu0 0
        %929 = vmatpush1.bf16.msra.mxu0 0
        %930 = vmatprep.subr.bf16.mxu0 0
        %931 = vmatpush1.bf16.msra.mxu0 0
        %932 = vmatprep.subr.bf16.mxu0 0
        %933 = vmatpush1.bf16.msra.mxu0 0
        %934 = vmatprep.subr.bf16.mxu0 0
        %935 = vmatpush1.bf16.msra.mxu0 0
        %936 = vmatprep.subr.bf16.mxu0 0
        %937 = vmatpush1.bf16.msra.mxu0 0
        %938 = vmatprep.subr.bf16.mxu0 0
        %939 = vmatpush1.bf16.msra.mxu0 0
        %940 = vmatprep.subr.bf16.mxu0 0
        %941 = vmatpush1.bf16.msra.mxu0 0
        %942 = vmatprep.subr.bf16.mxu0 0
        %943 = vmatpush1.bf16.msra.mxu0 0
        %944 = vmatprep.subr.bf16.mxu0 0
        %945 = vmatpush1.bf16.msra.mxu0 0
        %946 = vmatprep.subr.bf16.mxu0 0
        %947 = vmatpush1.bf16.msra.mxu0 0
        %948 = vmatprep.subr.bf16.mxu0 0
        %949 = vmatpush1.bf16.msra.mxu0 0
        %950 = vmatprep.subr.bf16.mxu0 0
        %951 = vmatpush1.bf16.msra.mxu0 0
        %952 = vmatprep.mubr.bf16.mxu0 0
        %953 = vmatmul.mubr.bf16.gmra.mrb[0].mxu0 %v915
        %v954 = vpop.f32.mrb[0].mxu0
        %v955 = vadd.f32 0.0, %v954
        %v956 = vpop.f32.mrb[0].mxu0
        %v957 = vpop.f32.mrb[0].mxu0
        %v958 = vpop.f32.mrb[0].mxu0
        %959 = vdwg.mxu0
        %v960 = vrcp.pop %v909
        %v961 = vmul.f32 %v955, %v960
        %962 = vrot.lane.b32.xlu0 %v733, 112
        %v963 = vpop.permute.xlu0 %962
        %964 = vrot.lane.b32.xlu0 %v734, 112
        %v965 = vpop.permute.xlu0 %964
        %v967 = vsel %vm741, %v963, 0
        %v970 = vsel %vm741, %v965, 0
        %972 = vmatprep.subr.bf16.mxu0 0
        %973 = vmatpush1.bf16.xpose.msra.mxu0 %v970
        %974 = vmatprep.subr.bf16.mxu0 0
        %975 = vmatpush1.bf16.xpose.msra.mxu0 0
        %976 = vmatprep.subr.bf16.mxu0 0
        %977 = vmatpush1.bf16.xpose.msra.mxu0 0
        %978 = vmatprep.subr.bf16.mxu0 0
        %979 = vmatpush1.bf16.xpose.msra.mxu0 0
        %980 = vmatprep.subr.bf16.mxu0 0
        %981 = vmatpush1.bf16.xpose.msra.mxu0 0
        %982 = vmatprep.subr.bf16.mxu0 0
        %983 = vmatpush1.bf16.xpose.msra.mxu0 0
        %984 = vmatprep.subr.bf16.mxu0 0
        %985 = vmatpush1.bf16.xpose.msra.mxu0 0
        %986 = vmatprep.subr.bf16.mxu0 0
        %987 = vmatpush1.bf16.xpose.msra.mxu0 0
        %988 = vmatprep.subr.bf16.mxu0 0
        %989 = vmatpush1.bf16.xpose.msra.mxu0 0
        %990 = vmatprep.subr.bf16.mxu0 0
        %991 = vmatpush1.bf16.xpose.msra.mxu0 0
        %992 = vmatprep.subr.bf16.mxu0 0
        %993 = vmatpush1.bf16.xpose.msra.mxu0 0
        %994 = vmatprep.subr.bf16.mxu0 0
        %995 = vmatpush1.bf16.xpose.msra.mxu0 0
        %996 = vmatprep.subr.bf16.mxu0 0
        %997 = vmatpush1.bf16.xpose.msra.mxu0 0
        %998 = vmatprep.subr.bf16.mxu0 0
        %999 = vmatpush1.bf16.xpose.msra.mxu0 0
        %1000 = vmatprep.subr.bf16.mxu0 0
        %1001 = vmatpush1.bf16.xpose.msra.mxu0 0
        %1002 = vmatprep.subr.bf16.mxu0 0
        %1003 = vmatpush1.bf16.xpose.msra.mxu0 0
        %1004 = vmatprep.mubr.bf16.mxu0 0
        %1005 = vmatmul.mubr.bf16.gmra.mrb[0].mxu0 %v967
        %v1006 = vpop.f32.mrb[0].mxu0
        %v1007 = vadd.f32 0.0, %v1006
        %v1008 = vpop.f32.mrb[0].mxu0
        %v1009 = vpop.f32.mrb[0].mxu0
        %v1010 = vpop.f32.mrb[0].mxu0
        %1011 = vdwg.mxu0
        %v1012 = vsel %vm740, %v1007, -1e+30
        %v1013 = vsel %vm741, %v1012, -inf
        %1014 = vmax.xlane.f32.xlu0 %v1013
        %v1015 = vpop.xlane.xlu0 %1014
        %v1016 = vsub.f32 %v1012, %v1015
        %v1017 = vmul.f32 %v1016, 1.442695
        %v1018 = vpow.pop %v1017
        %v1019 = vsel %vm741, %v1018, 0.0
        %1020 = vadd.xlane.f32.xlu0 %v1019
        %v1021 = vpop.xlane.xlu0 %1020
        %v1022 = vpack.c.bf16 %v1018, %v1018
        %1023 = vrot.lane.b32.xlu0 %v735, 112
        %v1024 = vpop.permute.xlu0 %1023
        %v1026 = vsel %vm741, %v1022, 0
        %v1029 = vsel %vm802, %v1024, 0
        %1031 = vmatprep.subr.bf16.mxu0 0
        %1032 = vmatpush1.bf16.msra.mxu0 %v1029
        %1033 = vmatprep.subr.bf16.mxu0 0
        %1034 = vmatpush1.bf16.msra.mxu0 0
        %1035 = vmatprep.subr.bf16.mxu0 0
        %1036 = vmatpush1.bf16.msra.mxu0 0
        %1037 = vmatprep.subr.bf16.mxu0 0
        %1038 = vmatpush1.bf16.msra.mxu0 0
        %1039 = vmatprep.subr.bf16.mxu0 0
        %1040 = vmatpush1.bf16.msra.mxu0 0
        %1041 = vmatprep.subr.bf16.mxu0 0
        %1042 = vmatpush1.bf16.msra.mxu0 0
        %1043 = vmatprep.subr.bf16.mxu0 0
        %1044 = vmatpush1.bf16.msra.mxu0 0
        %1045 = vmatprep.subr.bf16.mxu0 0
        %1046 = vmatpush1.bf16.msra.mxu0 0
        %1047 = vmatprep.subr.bf16.mxu0 0
        %1048 = vmatpush1.bf16.msra.mxu0 0
        %1049 = vmatprep.subr.bf16.mxu0 0
        %1050 = vmatpush1.bf16.msra.mxu0 0
        %1051 = vmatprep.subr.bf16.mxu0 0
        %1052 = vmatpush1.bf16.msra.mxu0 0
        %1053 = vmatprep.subr.bf16.mxu0 0
        %1054 = vmatpush1.bf16.msra.mxu0 0
        %1055 = vmatprep.subr.bf16.mxu0 0
        %1056 = vmatpush1.bf16.msra.mxu0 0
        %1057 = vmatprep.subr.bf16.mxu0 0
        %1058 = vmatpush1.bf16.msra.mxu0 0
        %1059 = vmatprep.subr.bf16.mxu0 0
        %1060 = vmatpush1.bf16.msra.mxu0 0
        %1061 = vmatprep.subr.bf16.mxu0 0
        %1062 = vmatpush1.bf16.msra.mxu0 0
        %1063 = vmatprep.mubr.bf16.mxu0 0
        %1064 = vmatmul.mubr.bf16.gmra.mrb[0].mxu0 %v1026
        %v1065 = vpop.f32.mrb[0].mxu0
        %v1066 = vadd.f32 0.0, %v1065
        %v1067 = vpop.f32.mrb[0].mxu0
        %v1068 = vpop.f32.mrb[0].mxu0
        %v1069 = vpop.f32.mrb[0].mxu0
        %1070 = vdwg.mxu0
        %v1071 = vrcp.pop %v1021
        %v1072 = vmul.f32 %v1066, %v1071
        %1073 = vrot.lane.b32.xlu0 %v733, 104
        %v1074 = vpop.permute.xlu0 %1073
        %1075 = vrot.lane.b32.xlu0 %v734, 104
        %v1076 = vpop.permute.xlu0 %1075
        %v1078 = vsel %vm741, %v1074, 0
        %v1081 = vsel %vm741, %v1076, 0
        %1083 = vmatprep.subr.bf16.mxu0 0
        %1084 = vmatpush1.bf16.xpose.msra.mxu0 %v1081
        %1085 = vmatprep.subr.bf16.mxu0 0
        %1086 = vmatpush1.bf16.xpose.msra.mxu0 0
        %1087 = vmatprep.subr.bf16.mxu0 0
        %1088 = vmatpush1.bf16.xpose.msra.mxu0 0
        %1089 = vmatprep.subr.bf16.mxu0 0
        %1090 = vmatpush1.bf16.xpose.msra.mxu0 0
        %1091 = vmatprep.subr.bf16.mxu0 0
        %1092 = vmatpush1.bf16.xpose.msra.mxu0 0
        %1093 = vmatprep.subr.bf16.mxu0 0
        %1094 = vmatpush1.bf16.xpose.msra.mxu0 0
        %1095 = vmatprep.subr.bf16.mxu0 0
        %1096 = vmatpush1.bf16.xpose.msra.mxu0 0
        %1097 = vmatprep.subr.bf16.mxu0 0
        %1098 = vmatpush1.bf16.xpose.msra.mxu0 0
        %1099 = vmatprep.subr.bf16.mxu0 0
        %1100 = vmatpush1.bf16.xpose.msra.mxu0 0
        %1101 = vmatprep.subr.bf16.mxu0 0
        %1102 = vmatpush1.bf16.xpose.msra.mxu0 0
        %1103 = vmatprep.subr.bf16.mxu0 0
        %1104 = vmatpush1.bf16.xpose.msra.mxu0 0
        %1105 = vmatprep.subr.bf16.mxu0 0
        %1106 = vmatpush1.bf16.xpose.msra.mxu0 0
        %1107 = vmatprep.subr.bf16.mxu0 0
        %1108 = vmatpush1.bf16.xpose.msra.mxu0 0
        %1109 = vmatprep.subr.bf16.mxu0 0
        %1110 = vmatpush1.bf16.xpose.msra.mxu0 0
        %1111 = vmatprep.subr.bf16.mxu0 0
        %1112 = vmatpush1.bf16.xpose.msra.mxu0 0
        %1113 = vmatprep.subr.bf16.mxu0 0
        %1114 = vmatpush1.bf16.xpose.msra.mxu0 0
        %1115 = vmatprep.mubr.bf16.mxu0 0
        %1116 = vmatmul.mubr.bf16.gmra.mrb[0].mxu0 %v1078
        %v1117 = vpop.f32.mrb[0].mxu0
        %v1118 = vadd.f32 0.0, %v1117
        %v1119 = vpop.f32.mrb[0].mxu0
        %v1120 = vpop.f32.mrb[0].mxu0
        %v1121 = vpop.f32.mrb[0].mxu0
        %1122 = vdwg.mxu0
        %v1123 = vsel %vm740, %v1118, -1e+30
        %v1124 = vsel %vm741, %v1123, -inf
        %1125 = vmax.xlane.f32.xlu0 %v1124
        %v1126 = vpop.xlane.xlu0 %1125
        %v1127 = vsub.f32 %v1123, %v1126
        %v1128 = vmul.f32 %v1127, 1.442695
        %v1129 = vpow.pop %v1128
        %v1130 = vsel %vm741, %v1129, 0.0
        %1131 = vadd.xlane.f32.xlu0 %v1130
        %v1132 = vpop.xlane.xlu0 %1131
        %v1133 = vpack.c.bf16 %v1129, %v1129
        %1134 = vrot.lane.b32.xlu0 %v735, 104
        %v1135 = vpop.permute.xlu0 %1134
        %v1137 = vsel %vm741, %v1133, 0
        %v1140 = vsel %vm802, %v1135, 0
        %1142 = vmatprep.subr.bf16.mxu0 0
        %1143 = vmatpush1.bf16.msra.mxu0 %v1140
        %1144 = vmatprep.subr.bf16.mxu0 0
        %1145 = vmatpush1.bf16.msra.mxu0 0
        %1146 = vmatprep.subr.bf16.mxu0 0
        %1147 = vmatpush1.bf16.msra.mxu0 0
        %1148 = vmatprep.subr.bf16.mxu0 0
        %1149 = vmatpush1.bf16.msra.mxu0 0
        %1150 = vmatprep.subr.bf16.mxu0 0
        %1151 = vmatpush1.bf16.msra.mxu0 0
        %1152 = vmatprep.subr.bf16.mxu0 0
        %1153 = vmatpush1.bf16.msra.mxu0 0
        %1154 = vmatprep.subr.bf16.mxu0 0
        %1155 = vmatpush1.bf16.msra.mxu0 0
        %1156 = vmatprep.subr.bf16.mxu0 0
        %1157 = vmatpush1.bf16.msra.mxu0 0
        %1158 = vmatprep.subr.bf16.mxu0 0
        %1159 = vmatpush1.bf16.msra.mxu0 0
        %1160 = vmatprep.subr.bf16.mxu0 0
        %1161 = vmatpush1.bf16.msra.mxu0 0
        %1162 = vmatprep.subr.bf16.mxu0 0
        %1163 = vmatpush1.bf16.msra.mxu0 0
        %1164 = vmatprep.subr.bf16.mxu0 0
        %1165 = vmatpush1.bf16.msra.mxu0 0
        %1166 = vmatprep.subr.bf16.mxu0 0
        %1167 = vmatpush1.bf16.msra.mxu0 0
        %1168 = vmatprep.subr.bf16.mxu0 0
        %1169 = vmatpush1.bf16.msra.mxu0 0
        %1170 = vmatprep.subr.bf16.mxu0 0
        %1171 = vmatpush1.bf16.msra.mxu0 0
        %1172 = vmatprep.subr.bf16.mxu0 0
        %1173 = vmatpush1.bf16.msra.mxu0 0
        %1174 = vmatprep.mubr.bf16.mxu0 0
        %1175 = vmatmul.mubr.bf16.gmra.mrb[0].mxu0 %v1137
        %v1176 = vpop.f32.mrb[0].mxu0
        %v1177 = vadd.f32 0.0, %v1176
        %v1178 = vpop.f32.mrb[0].mxu0
        %v1179 = vpop.f32.mrb[0].mxu0
        %v1180 = vpop.f32.mrb[0].mxu0
        %1181 = vdwg.mxu0
        %v1182 = vrcp.pop %v1132
        %v1183 = vmul.f32 %v1177, %v1182
        %1185 = vrot.lane.b32.xlu0 %v961, 8
        %v1186 = vpop.permute.xlu0 %1185
        %1189 = vrot.lane.b32.xlu0 %v1072, 16
        %v1190 = vpop.permute.xlu0 %1189
        %1193 = vrot.lane.b32.xlu0 %v1183, 24
        %v1194 = vpop.permute.xlu0 %1193
        %v1196 = vsel %vm741, %v847, %v1186
        %vm1197 = vcmask 130048
        %v1198 = vsel %vm1197, %v1196, %v1190
        %vm1199 = vcmask 195584
        %v1200 = vsel %vm1199, %v1198, %v1194
        %v1201 = vpack.c.bf16 %v1200, %v1200
        %v1202 = vld [vmem:[%s9] sm:$0xf]
        %v1203 = vld [vmem:[%s9 + $0x4] sm:$0xf]
        %v1204 = vld [vmem:[%s9 + $0x8] sm:$0xf]
        %v1205 = vld [vmem:[%s9 + $0xc] sm:$0xf]
        %v1206 = vld [vmem:[%s10] sm:$0x1]
        %v1208 = vlaneseq
        %v1209 = vshrl.u32 %v1208, 7
        %v1210 = vsub.s32 0, %v1209
        %v1211 = vrot.slane %v1206, %v1210
        %v1217 = vunpack.c.l.b16 %v1202
        %v1218 = vunpack.c.l.b16 %v1203
        %v1219 = vunpack.c.l.b16 %v1204
        %v1220 = vunpack.c.l.b16 %v1205
        %v1221 = vpack.c.b16 %v1218, %v1217
        %v1222 = vpack.c.b16 %v1220, %v1219
        %v1224 = vsel %vm539, %v1201, 0
        %v1227 = vsel %vm539, %v1221, 0
        %v1230 = vsel %vm539, %v1222, 0
        %1232 = vmatprep.subr.bf16.mxu0 0
        %1233 = vmatpush1.bf16.xpose.msra.mxu0 %v1227
        %1234 = vmatprep.subr.bf16.mxu0 0
        %1235 = vmatpush1.bf16.xpose.msra.mxu0 %v1230
        %1236 = vmatprep.subr.bf16.mxu0 0
        %1237 = vmatpush1.bf16.xpose.msra.mxu0 0
        %1238 = vmatprep.subr.bf16.mxu0 0
        %1239 = vmatpush1.bf16.xpose.msra.mxu0 0
        %1240 = vmatprep.subr.bf16.mxu0 0
        %1241 = vmatpush1.bf16.xpose.msra.mxu0 0
        %1242 = vmatprep.subr.bf16.mxu0 0
        %1243 = vmatpush1.bf16.xpose.msra.mxu0 0
        %1244 = vmatprep.subr.bf16.mxu0 0
        %1245 = vmatpush1.bf16.xpose.msra.mxu0 0
        %1246 = vmatprep.subr.bf16.mxu0 0
        %1247 = vmatpush1.bf16.xpose.msra.mxu0 0
        %1248 = vmatprep.subr.bf16.mxu0 0
        %1249 = vmatpush1.bf16.xpose.msra.mxu0 0
        %1250 = vmatprep.subr.bf16.mxu0 0
        %1251 = vmatpush1.bf16.xpose.msra.mxu0 0
        %1252 = vmatprep.subr.bf16.mxu0 0
        %1253 = vmatpush1.bf16.xpose.msra.mxu0 0
        %1254 = vmatprep.subr.bf16.mxu0 0
        %1255 = vmatpush1.bf16.xpose.msra.mxu0 0
        %1256 = vmatprep.subr.bf16.mxu0 0
        %1257 = vmatpush1.bf16.xpose.msra.mxu0 0
        %1258 = vmatprep.subr.bf16.mxu0 0
        %1259 = vmatpush1.bf16.xpose.msra.mxu0 0
        %1260 = vmatprep.subr.bf16.mxu0 0
        %1261 = vmatpush1.bf16.xpose.msra.mxu0 0
        %1262 = vmatprep.subr.bf16.mxu0 0
        %1263 = vmatpush1.bf16.xpose.msra.mxu0 0
        %1264 = vmatprep.mubr.bf16.mxu0 0
        %1265 = vmatmul.mubr.bf16.gmra.mrb[0].mxu0 %v1224
        %v1266 = vpop.f32.mrb[0].mxu0
        %v1267 = vadd.f32 %v1211, %v1266
        %v1268 = vpop.f32.mrb[0].mxu0
        %v1269 = vpop.f32.mrb[0].mxu0
        %v1270 = vpop.f32.mrb[0].mxu0
        %1271 = vdwg.mxu0
        %1272 = vst.msk [vmem:[%s514] sm:$0xff] %vm539, %v1267
        %s1273 = sand.u32 %s287, 1
        %s1274 = scalar_lea.sflag [#allocation4], %s1273
        %s1275 = sand.u32 %s287, 1
        %s1276 = smul.addr %s1275, 8
        %s1277 = scalar_lea.vmem [#allocation13], %s1276
        // Predicated region
        $region89: #{tpu_custom_call.1} parent=63 // pred_check
          %p1278 = pneg %p297
        $region90: #{tpu_custom_call.1} parent=63 // pred_check_branch
          %1280 = sbr.rel (%p1278) target = $region92
        $region91: #{tpu_custom_call.1} parent=63 // pred_region
          %s1282 = ssub.s32 128, 128
          %1283 = vsyncadd %s1274, %s1282
          %s1284 = smul.addr %s33, 128
          %s1285 = scalar_lea.hbm %s11, %s1284
          %s1287 = sshll.u32 %s1277, 4
          %s1288 = int_to_ptr.vmem [resolvable:$true] %s1287
          %1290 = dma.vmem_to_hbm [thread:$0]  %s1288, 128, %s1285, %s1274
        $region92: #{tpu_custom_call.1} parent=63 // pred_fallthru
          _
      $region64: #{tpu_custom_call.1} parent=5 // pred_fallthru
        _
      %p1291 = scmp.le.s32.totalorder 2, %s28
      // Predicated region
      $region93: #{tpu_custom_call.1} parent=5 // pred_check
        %p1292 = pneg %p1291
      $region94: #{tpu_custom_call.1} parent=5 // pred_check_branch
        %1294 = sbr.rel (%p1292) target = $region96
      $region95: #{tpu_custom_call.1} parent=5 // pred_region
        %s1295 = ssub.s32 %s28, 2
        // Predicated region
        $region97: #{tpu_custom_call.1} parent=95 // pred_check
          %p1296 = pneg %p303
        $region98: #{tpu_custom_call.1} parent=95 // pred_check_branch
          %1298 = sbr.rel (%p1296) target = $region100
        $region99: #{tpu_custom_call.1} parent=95 // pred_region
          %s1299 = sand.u32 %s288, 1
          %s1300 = scalar_lea.sflag [#allocation4], %s1299
          %s1301 = sand.u32 %s288, 1
          %s1302 = smul.addr %s1301, 8
          %s1303 = scalar_lea.vmem [#allocation13], %s1302
          %1304 = dma.done %s1300, 128
        $region100: #{tpu_custom_call.1} parent=95 // pred_fallthru
          _
      $region96: #{tpu_custom_call.1} parent=5 // pred_fallthru
        _
    $region6: #{tpu_custom_call.1} parent=1 // loop_footer
      %s32 = sadd.s32 1, %s28
    $region7: #{tpu_custom_call.1} parent=1 // loop_footer_branch
      %27 = sbr.rel target = $region3
    $region8: #{tpu_custom_call.1} parent=1 // loop_exit
      _
    %1305 = vsyncpa [#allocation3], 1
    %s1306 = scalar_lea.sflag [#allocation3], 1
    %1307 = vsyncpa %s1306, 1
    %1308 = vsyncpa [#allocation6], 1
    %s1309 = scalar_lea.sflag [#allocation6], 1
    %1310 = vsyncpa %s1309, 1
    %1311 = vsyncpa [#allocation9], 1
    %1312 = vsyncpa [#allocation12], 1
    %1313 = vsyncpa [#allocation4], 1
    %s1314 = scalar_lea.sflag [#allocation4], 1
    %1315 = vsyncpa %s1314, 1

</llo_original>
